<compile_context>
chip_gen: v6e
topology: v6e:2x2x1
jax: 0.10.0
libtpu: 0.0.40
codegen_flags: <defaults>
</compile_context>

<pallas_src>
import jax
import jax.numpy as jnp
from jax.experimental import pallas as pl
from jax.experimental.pallas import tpu as pltpu

EPS = 1e-6  # ieps_ln_default


def _lstm_affn_kernel(x_ref, hprev_ref, cprev_ref,
                      wx_ref, wh_ref, bfull_ref,
                      g3_ref, b3_ref, g1_ref, be1_ref,
                      w2_ref, b2_ref,
                      out_ref, cell_ref):
    osize = cprev_ref.shape[-1]
    gsz = 3 * osize                 # true gate-slab width (96 for osize=32)
    gpad = g3_ref.shape[-1]         # gate width padded to a multiple of 128 lanes

    x = x_ref[...]
    h = hprev_ref[...]
    c = cprev_ref[...].astype(jnp.float32)

    # ---- fused input matmuls (no concat): one [tm, gpad+hsize] slab holds both the
    #      pre-LN gates (cols :gpad) and the pre-LN hidden path (cols gpad:). ----
    z = (jnp.dot(x, wx_ref[...], preferred_element_type=jnp.float32)
         + jnp.dot(h, wh_ref[...], preferred_element_type=jnp.float32)
         + bfull_ref[...])

    gate_pre = z[:, :gpad]          # lane-tile aligned split
    hid_pre = z[:, gpad:]

    # ---- gates: LayerNorm over the (3, osize) slab, masked to the true gsz cols ----
    col = jax.lax.broadcasted_iota(jnp.int32, (1, gpad), 1)
    gmask = (col < gsz).astype(jnp.float32)
    mu = jnp.sum(gate_pre * gmask, axis=-1, keepdims=True) * (1.0 / gsz)
    diff = (gate_pre - mu) * gmask
    var = jnp.sum(diff * diff, axis=-1, keepdims=True) * (1.0 / gsz)
    zn = diff * jax.lax.rsqrt(var + EPS) * g3_ref[...] + b3_ref[...]
    gates = jax.nn.sigmoid(zn)
    # view(..., 3, osize).unbind(-2)  <=>  contiguous chunks of the last dim
    ig = gates[:, 0:osize]
    fg = gates[:, osize:2 * osize]
    og = gates[:, 2 * osize:3 * osize]

    # ---- hidden path: LayerNorm -> ReLU -> Linear (b1 already folded into bfull) ----
    mu1 = jnp.mean(hid_pre, axis=-1, keepdims=True)
    var1 = jnp.mean(jnp.square(hid_pre - mu1), axis=-1, keepdims=True)
    h1 = (hid_pre - mu1) * jax.lax.rsqrt(var1 + EPS) * g1_ref[...] + be1_ref[...]
    h1 = jnp.maximum(h1, 0.0)
    hidden = (jnp.dot(h1.astype(w2_ref.dtype), w2_ref[...],
                      preferred_element_type=jnp.float32) + b2_ref[...])

    # ---- LSTM cell update ----
    cell = fg * c + ig * hidden
    out = og * cell
    out_ref[...] = out.astype(out_ref.dtype)
    cell_ref[...] = cell.astype(cell_ref.dtype)


def _pack_params(params, isize, osize, hsize, w_dtype):
    """One-time wrapper-side packing: split trans W into x/h halves, pad the gate columns
    to a lane tile, and fuse with net.0's W1 so the kernel needs only two input dots."""
    gsz = 3 * osize
    gpad = pl.cdiv(gsz, 128) * 128
    pad = gpad - gsz
    padc = lambda a: jnp.pad(a, ((0, 0), (0, pad)))

    wt_x = params["wt"][:isize]     # trans weight, x half
    wt_h = params["wt"][isize:]     # trans weight, h half
    w_x = jnp.concatenate([padc(wt_x), params["w1"]], axis=1).astype(w_dtype)
    w_h = jnp.concatenate([padc(wt_h), params["w1"]], axis=1).astype(w_dtype)
    b_full = jnp.concatenate([padc(params["bt"]), params["b1"]], axis=1).astype(jnp.float32)
    g3 = padc(params["g3"]).astype(jnp.float32)
    b3 = padc(params["b3"]).astype(jnp.float32)
    g1 = params["g1"].astype(jnp.float32)
    be1 = params["be1"].astype(jnp.float32)
    w2 = params["w2"].astype(w_dtype)
    b2 = params["b2"].astype(jnp.float32)
    return w_x, w_h, b_full, g3, b3, g1, be1, w2, b2, gpad


def lstm_cell_affn(x, h_prev, c_prev, params, *, tm=256, io_dtype=None):
    """x, h_prev, c_prev: [N, isize] (isize == osize). Returns (out, cell) in io_dtype."""
    N, isize = x.shape
    osize = h_prev.shape[-1]
    hsize = params["w1"].shape[-1]
    io_dtype = x.dtype if io_dtype is None else io_dtype

    (w_x, w_h, b_full, g3, b3, g1, be1, w2, b2, gpad) = _pack_params(
        params, isize, osize, hsize, io_dtype)

    # Large row tile (sweep 256-1024); pad N up so the grid divides evenly.
    grid_n = max(1, pl.cdiv(N, tm))
    n_pad = grid_n * tm

    def prep(a):
        a = a.astype(io_dtype)
        if n_pad != N:
            a = jnp.pad(a, ((0, n_pad - N), (0, 0)))
        return a

    xf, hf, cf = prep(x), prep(h_prev), prep(c_prev)

    full = lambda shape: pl.BlockSpec(shape, lambda i: (0,) * len(shape))
    row = lambda d: pl.BlockSpec((tm, d), lambda i: (i, 0))

    out_shape = (jax.ShapeDtypeStruct((n_pad, osize), io_dtype),
                 jax.ShapeDtypeStruct((n_pad, osize), io_dtype))

    grid_spec = pltpu.PrefetchScalarGridSpec(
        num_scalar_prefetch=0,
        grid=(grid_n,),
        in_specs=[
            row(isize), row(osize), row(osize),          # x, h_prev, c_prev (row tiles)
            full((isize, gpad + hsize)),                 # fused W_x  (VMEM-resident)
            full((osize, gpad + hsize)),                 # fused W_h
            full((1, gpad + hsize)),                     # fused bias [bt_pad | b1]
            full((1, gpad)), full((1, gpad)),            # gate LN gamma / beta (padded)
            full((1, hsize)), full((1, hsize)),          # hidden LN gamma / beta
            full((hsize, isize)), full((1, isize)),      # net.3 W, b
        ],
        out_specs=[row(osize), row(osize)],
    )

    itemsize = jnp.dtype(io_dtype).itemsize
    w_bytes = ((w_x.size + w_h.size + w2.size) * itemsize
               + (b_full.size + g3.size + b3.size + g1.size + be1.size + b2.size) * 4)
    cost = pl.CostEstimate(
        flops=2 * n_pad * ((isize + osize) * (gpad + hsize) + hsize * isize),
        transcendentals=n_pad * (3 * osize + 2),
        bytes_accessed=(3 * isize + 2 * osize) * n_pad * itemsize + w_bytes,
    )

    out, cell = pl.pallas_call(
        _lstm_affn_kernel,
        out_shape=out_shape,
        grid_spec=grid_spec,
        compiler_params=pltpu.CompilerParams(dimension_semantics=("parallel",)),
        cost_estimate=cost,
    )(xf, hf, cf, w_x, w_h, b_full, g3, b3, g1, be1, w2, b2)

    if n_pad != N:
        out, cell = out[:N], cell[:N]
    return out, cell


def _reference(x, h_prev, c_prev, p):
    """Pure-JAX reference of the PyTorch forward."""
    osize = h_prev.shape[-1]
    icat = jnp.concatenate([x, h_prev], axis=-1)
    z = icat @ p["wt"] + p["bt"]
    mu = z.mean(-1, keepdims=True)
    var = ((z - mu) ** 2).mean(-1, keepdims=True)
    zn = (z - mu) / jnp.sqrt(var + EPS) * p["g3"] + p["b3"]
    g = jax.nn.sigmoid(zn)
    ig, fg, og = g[:, :osize], g[:, osize:2 * osize], g[:, 2 * osize:]
    h0 = x + h_prev
    h1 = h0 @ p["w1"] + p["b1"]
    mu1 = h1.mean(-1, keepdims=True)
    var1 = ((h1 - mu1) ** 2).mean(-1, keepdims=True)
    h1 = (h1 - mu1) / jnp.sqrt(var1 + EPS) * p["g1"] + p["be1"]
    h1 = jnp.maximum(h1, 0.0)
    hidden = h1 @ p["w2"] + p["b2"]
    cell = fg * c_prev + ig * hidden
    return og * cell, cell


if __name__ == "__main__":
    # Shapes consistent with the module: isize = osize = 32, hsize = 4*osize = 128.
    isize = 32
    osize = isize
    hsize = 4 * osize

    key = jax.random.PRNGKey(0)
    ks = jax.random.split(key, 16)
    sc = 0.1
    params = {
        "wt": sc * jax.random.normal(ks[0], (isize + osize, 3 * osize), jnp.float32),
        "bt": sc * jax.random.normal(ks[1], (1, 3 * osize), jnp.float32),
        "g3": 1.0 + sc * jax.random.normal(ks[2], (1, 3 * osize), jnp.float32),
        "b3": sc * jax.random.normal(ks[3], (1, 3 * osize), jnp.float32),
        "w1": sc * jax.random.normal(ks[4], (isize, hsize), jnp.float32),
        "b1": sc * jax.random.normal(ks[5], (1, hsize), jnp.float32),
        "g1": 1.0 + sc * jax.random.normal(ks[6], (1, hsize), jnp.float32),
        "be1": sc * jax.random.normal(ks[7], (1, hsize), jnp.float32),
        "w2": sc * jax.random.normal(ks[8], (hsize, isize), jnp.float32),
        "b2": sc * jax.random.normal(ks[9], (1, isize), jnp.float32),
    }

    # --- correctness check: small shapes (batch=2, seq=8), f32 I/O, tight tolerance ---
    batch, seq = 2, 8
    N = batch * seq
    x = jax.random.normal(ks[10], (batch, seq, isize), jnp.float32)
    h0 = jax.random.normal(ks[11], (batch, seq, osize), jnp.float32)
    c0 = jax.random.normal(ks[12], (batch, seq, osize), jnp.float32)
    xf, hf, cf = (a.reshape(N, -1) for a in (x, h0, c0))

    out, cell = lstm_cell_affn(xf, hf, cf, params, tm=256, io_dtype=jnp.float32)
    out = jax.block_until_ready(out)
    cell = jax.block_until_ready(cell)
    ref_out, ref_cell = _reference(xf, hf, cf, params)
    assert jnp.allclose(out, ref_out, atol=1e-4, rtol=1e-4)
    assert jnp.allclose(cell, ref_cell, atol=1e-4, rtol=1e-4)
    out = out.reshape(batch, seq, osize)
    cell = cell.reshape(batch, seq, osize)

    # --- larger run: multi-step grid (N=1024, tm=256 -> 4 steps) with bf16 HBM I/O ---
    N2 = 8 * 128
    x2 = jax.random.normal(ks[13], (N2, isize), jnp.float32).astype(jnp.bfloat16)
    h2 = jax.random.normal(ks[14], (N2, osize), jnp.float32).astype(jnp.bfloat16)
    c2 = jax.random.normal(ks[15], (N2, osize), jnp.float32).astype(jnp.bfloat16)

    out2, cell2 = lstm_cell_affn(x2, h2, c2, params, tm=256, io_dtype=jnp.bfloat16)
    out2 = jax.block_until_ready(out2)
    cell2 = jax.block_until_ready(cell2)
    ref2_out, ref2_cell = _reference(x2.astype(jnp.float32),
                                     h2.astype(jnp.float32),
                                     c2.astype(jnp.float32), params)
    assert jnp.allclose(out2.astype(jnp.float32), ref2_out, atol=5e-2, rtol=5e-2)
    assert jnp.allclose(cell2.astype(jnp.float32), ref2_cell, atol=5e-2, rtol=5e-2)

    print("KERNEL_OK")
</pallas_src>

<mosaic_0001>
module attributes {stable_mosaic.version = 11 : i64} {
  func.func @_lstm_affn_kernel(%arg0: i32, %arg1: memref<256x32xf32, #tpu.memory_space<vmem>>, %arg2: memref<256x32xf32, #tpu.memory_space<vmem>>, %arg3: memref<256x32xf32, #tpu.memory_space<vmem>>, %arg4: memref<32x256xf32, #tpu.memory_space<vmem>>, %arg5: memref<32x256xf32, #tpu.memory_space<vmem>>, %arg6: memref<1x256xf32, #tpu.memory_space<vmem>>, %arg7: memref<1x128xf32, #tpu.memory_space<vmem>>, %arg8: memref<1x128xf32, #tpu.memory_space<vmem>>, %arg9: memref<1x128xf32, #tpu.memory_space<vmem>>, %arg10: memref<1x128xf32, #tpu.memory_space<vmem>>, %arg11: memref<128x32xf32, #tpu.memory_space<vmem>>, %arg12: memref<1x32xf32, #tpu.memory_space<vmem>>, %arg13: memref<256x32xf32, #tpu.memory_space<vmem>>, %arg14: memref<256x32xf32, #tpu.memory_space<vmem>>) attributes {dimension_semantics = [#tpu.dimension_semantics<parallel>], iteration_bounds = array<i64: 1>, scalar_prefetch = 0 : i64, scratch_operands = 0 : i64, tpu.core_type = #tpu.core_type<tc>, window_params = [{transform_indices = @transform_0, window_bounds = array<i64: 256, 32>}, {transform_indices = @transform_1, window_bounds = array<i64: 256, 32>}, {transform_indices = @transform_2, window_bounds = array<i64: 256, 32>}, {pipeline_mode = #tpu.pipeline_mode<synchronous>, transform_indices = @transform_3, window_bounds = array<i64: 32, 256>}, {pipeline_mode = #tpu.pipeline_mode<synchronous>, transform_indices = @transform_4, window_bounds = array<i64: 32, 256>}, {pipeline_mode = #tpu.pipeline_mode<synchronous>, transform_indices = @transform_5, window_bounds = array<i64: 1, 256>}, {pipeline_mode = #tpu.pipeline_mode<synchronous>, transform_indices = @transform_6, window_bounds = array<i64: 1, 128>}, {pipeline_mode = #tpu.pipeline_mode<synchronous>, transform_indices = @transform_7, window_bounds = array<i64: 1, 128>}, {pipeline_mode = #tpu.pipeline_mode<synchronous>, transform_indices = @transform_8, window_bounds = array<i64: 1, 128>}, {pipeline_mode = #tpu.pipeline_mode<synchronous>, transform_indices = @transform_9, window_bounds = array<i64: 1, 128>}, {pipeline_mode = #tpu.pipeline_mode<synchronous>, transform_indices = @transform_10, window_bounds = array<i64: 128, 32>}, {pipeline_mode = #tpu.pipeline_mode<synchronous>, transform_indices = @transform_11, window_bounds = array<i64: 1, 32>}, {transform_indices = @transform_12, window_bounds = array<i64: 256, 32>}, {transform_indices = @transform_13, window_bounds = array<i64: 256, 32>}]} {
    %c0 = arith.constant 0 : index
    %c0_0 = arith.constant 0 : index
    %0 = vector.load %arg1[%c0, %c0_0] : memref<256x32xf32, #tpu.memory_space<vmem>>, vector<256x32xf32>
    %c0_1 = arith.constant 0 : index
    %c0_2 = arith.constant 0 : index
    %1 = vector.load %arg2[%c0_1, %c0_2] : memref<256x32xf32, #tpu.memory_space<vmem>>, vector<256x32xf32>
    %c0_3 = arith.constant 0 : index
    %c0_4 = arith.constant 0 : index
    %2 = vector.load %arg3[%c0_3, %c0_4] : memref<256x32xf32, #tpu.memory_space<vmem>>, vector<256x32xf32>
    %c0_5 = arith.constant 0 : index
    %c0_6 = arith.constant 0 : index
    %3 = vector.load %arg4[%c0_5, %c0_6] : memref<32x256xf32, #tpu.memory_space<vmem>>, vector<32x256xf32>
    %cst = arith.constant dense<0.000000e+00> : vector<256x256xf32>
    %4 = tpu.matmul %0, %3, %cst {dimension_numbers = #tpu.dot_dimension_numbers<[1], [0], [0], [1], [0, 0, 1, 1], [], []>} : vector<256x32xf32>, vector<32x256xf32>, vector<256x256xf32> -> vector<256x256xf32>
    %c0_7 = arith.constant 0 : index
    %c0_8 = arith.constant 0 : index
    %5 = vector.load %arg5[%c0_7, %c0_8] : memref<32x256xf32, #tpu.memory_space<vmem>>, vector<32x256xf32>
    %cst_9 = arith.constant dense<0.000000e+00> : vector<256x256xf32>
    %6 = tpu.matmul %1, %5, %cst_9 {dimension_numbers = #tpu.dot_dimension_numbers<[1], [0], [0], [1], [0, 0, 1, 1], [], []>} : vector<256x32xf32>, vector<32x256xf32>, vector<256x256xf32> -> vector<256x256xf32>
    %7 = arith.addf %4, %6 : vector<256x256xf32>
    %c0_10 = arith.constant 0 : index
    %c0_11 = arith.constant 0 : index
    %8 = vector.load %arg6[%c0_10, %c0_11] : memref<1x256xf32, #tpu.memory_space<vmem>>, vector<1x256xf32>
    %9 = vector.broadcast %8 : vector<1x256xf32> to vector<256x256xf32>
    %10 = arith.addf %7, %9 : vector<256x256xf32>
    %11 = vector.extract_strided_slice %10 {offsets = [0, 0], sizes = [256, 128], strides = [1, 1]} : vector<256x256xf32> to vector<256x128xf32>
    %12 = vector.extract_strided_slice %10 {offsets = [0, 128], sizes = [256, 128], strides = [1, 1]} : vector<256x256xf32> to vector<256x128xf32>
    %13 = tpu.iota {dimensions = array<i32: 1>} : vector<1x128xi32>
    %c96_i32 = arith.constant 96 : i32
    %14 = vector.broadcast %c96_i32 : i32 to vector<1x128xi32>
    %15 = arith.cmpi slt, %13, %14 : vector<1x128xi32>
    %16 = arith.extui %15 : vector<1x128xi1> to vector<1x128xi32>
    %17 = arith.sitofp %16 : vector<1x128xi32> to vector<1x128xf32>
    %18 = vector.broadcast %17 : vector<1x128xf32> to vector<256x128xf32>
    %19 = arith.mulf %11, %18 : vector<256x128xf32>
    %cst_12 = arith.constant dense<0.000000e+00> : vector<256xf32>
    %20 = vector.multi_reduction <add>, %19, %cst_12 [1] : vector<256x128xf32> to vector<256xf32>
    %21 = vector.shape_cast %20 : vector<256xf32> to vector<256x1xf32>
    %cst_13 = arith.constant 0.010416667 : f32
    %22 = vector.broadcast %cst_13 : f32 to vector<256x1xf32>
    %23 = arith.mulf %21, %22 : vector<256x1xf32>
    %24 = vector.broadcast %23 : vector<256x1xf32> to vector<256x128xf32>
    %25 = arith.subf %11, %24 : vector<256x128xf32>
    %26 = vector.broadcast %17 : vector<1x128xf32> to vector<256x128xf32>
    %27 = arith.mulf %25, %26 : vector<256x128xf32>
    %28 = arith.mulf %27, %27 : vector<256x128xf32>
    %cst_14 = arith.constant dense<0.000000e+00> : vector<256xf32>
    %29 = vector.multi_reduction <add>, %28, %cst_14 [1] : vector<256x128xf32> to vector<256xf32>
    %30 = vector.shape_cast %29 : vector<256xf32> to vector<256x1xf32>
    %cst_15 = arith.constant 0.010416667 : f32
    %31 = vector.broadcast %cst_15 : f32 to vector<256x1xf32>
    %32 = arith.mulf %30, %31 : vector<256x1xf32>
    %cst_16 = arith.constant 9.99999997E-7 : f32
    %33 = vector.broadcast %cst_16 : f32 to vector<256x1xf32>
    %34 = arith.addf %32, %33 : vector<256x1xf32>
    %35 = math.rsqrt %34 : vector<256x1xf32>
    %36 = vector.broadcast %35 : vector<256x1xf32> to vector<256x128xf32>
    %37 = arith.mulf %27, %36 : vector<256x128xf32>
    %c0_17 = arith.constant 0 : index
    %c0_18 = arith.constant 0 : index
    %38 = vector.load %arg7[%c0_17, %c0_18] : memref<1x128xf32, #tpu.memory_space<vmem>>, vector<1x128xf32>
    %39 = vector.broadcast %38 : vector<1x128xf32> to vector<256x128xf32>
    %40 = arith.mulf %37, %39 : vector<256x128xf32>
    %c0_19 = arith.constant 0 : index
    %c0_20 = arith.constant 0 : index
    %41 = vector.load %arg8[%c0_19, %c0_20] : memref<1x128xf32, #tpu.memory_space<vmem>>, vector<1x128xf32>
    %42 = vector.broadcast %41 : vector<1x128xf32> to vector<256x128xf32>
    %43 = arith.addf %40, %42 : vector<256x128xf32>
    %44 = arith.negf %43 : vector<256x128xf32>
    %45 = math.exp %44 : vector<256x128xf32>
    %cst_21 = arith.constant 1.000000e+00 : f32
    %46 = vector.broadcast %cst_21 : f32 to vector<256x128xf32>
    %47 = arith.addf %46, %45 : vector<256x128xf32>
    %48 = arith.divf %46, %47 : vector<256x128xf32>
    %49 = vector.extract_strided_slice %48 {offsets = [0, 0], sizes = [256, 32], strides = [1, 1]} : vector<256x128xf32> to vector<256x32xf32>
    %50 = vector.extract_strided_slice %48 {offsets = [0, 32], sizes = [256, 32], strides = [1, 1]} : vector<256x128xf32> to vector<256x32xf32>
    %51 = vector.extract_strided_slice %48 {offsets = [0, 64], sizes = [256, 32], strides = [1, 1]} : vector<256x128xf32> to vector<256x32xf32>
    %cst_22 = arith.constant dense<0.000000e+00> : vector<256xf32>
    %52 = vector.multi_reduction <add>, %12, %cst_22 [1] : vector<256x128xf32> to vector<256xf32>
    %53 = vector.shape_cast %52 : vector<256xf32> to vector<256x1xf32>
    %cst_23 = arith.constant 1.280000e+02 : f32
    %54 = vector.broadcast %cst_23 : f32 to vector<256x1xf32>
    %55 = arith.divf %53, %54 : vector<256x1xf32>
    %56 = vector.broadcast %55 : vector<256x1xf32> to vector<256x128xf32>
    %57 = arith.subf %12, %56 : vector<256x128xf32>
    %58 = arith.mulf %57, %57 : vector<256x128xf32>
    %cst_24 = arith.constant dense<0.000000e+00> : vector<256xf32>
    %59 = vector.multi_reduction <add>, %58, %cst_24 [1] : vector<256x128xf32> to vector<256xf32>
    %60 = vector.shape_cast %59 : vector<256xf32> to vector<256x1xf32>
    %cst_25 = arith.constant 1.280000e+02 : f32
    %61 = vector.broadcast %cst_25 : f32 to vector<256x1xf32>
    %62 = arith.divf %60, %61 : vector<256x1xf32>
    %63 = vector.broadcast %55 : vector<256x1xf32> to vector<256x128xf32>
    %64 = arith.subf %12, %63 : vector<256x128xf32>
    %cst_26 = arith.constant 9.99999997E-7 : f32
    %65 = vector.broadcast %cst_26 : f32 to vector<256x1xf32>
    %66 = arith.addf %62, %65 : vector<256x1xf32>
    %67 = math.rsqrt %66 : vector<256x1xf32>
    %68 = vector.broadcast %67 : vector<256x1xf32> to vector<256x128xf32>
    %69 = arith.mulf %64, %68 : vector<256x128xf32>
    %c0_27 = arith.constant 0 : index
    %c0_28 = arith.constant 0 : index
    %70 = vector.load %arg9[%c0_27, %c0_28] : memref<1x128xf32, #tpu.memory_space<vmem>>, vector<1x128xf32>
    %71 = vector.broadcast %70 : vector<1x128xf32> to vector<256x128xf32>
    %72 = arith.mulf %69, %71 : vector<256x128xf32>
    %c0_29 = arith.constant 0 : index
    %c0_30 = arith.constant 0 : index
    %73 = vector.load %arg10[%c0_29, %c0_30] : memref<1x128xf32, #tpu.memory_space<vmem>>, vector<1x128xf32>
    %74 = vector.broadcast %73 : vector<1x128xf32> to vector<256x128xf32>
    %75 = arith.addf %72, %74 : vector<256x128xf32>
    %cst_31 = arith.constant 0.000000e+00 : f32
    %76 = vector.broadcast %cst_31 : f32 to vector<256x128xf32>
    %77 = arith.maximumf %75, %76 : vector<256x128xf32>
    %c0_32 = arith.constant 0 : index
    %c0_33 = arith.constant 0 : index
    %78 = vector.load %arg11[%c0_32, %c0_33] : memref<128x32xf32, #tpu.memory_space<vmem>>, vector<128x32xf32>
    %cst_34 = arith.constant dense<0.000000e+00> : vector<256x32xf32>
    %79 = tpu.matmul %77, %78, %cst_34 {dimension_numbers = #tpu.dot_dimension_numbers<[1], [0], [0], [1], [0, 0, 1, 1], [], []>} : vector<256x128xf32>, vector<128x32xf32>, vector<256x32xf32> -> vector<256x32xf32>
    %c0_35 = arith.constant 0 : index
    %c0_36 = arith.constant 0 : index
    %80 = vector.load %arg12[%c0_35, %c0_36] : memref<1x32xf32, #tpu.memory_space<vmem>>, vector<1x32xf32>
    %81 = vector.broadcast %80 : vector<1x32xf32> to vector<256x32xf32>
    %82 = arith.addf %79, %81 : vector<256x32xf32>
    %83 = arith.mulf %50, %2 : vector<256x32xf32>
    %84 = arith.mulf %49, %82 : vector<256x32xf32>
    %85 = arith.addf %83, %84 : vector<256x32xf32>
    %86 = arith.mulf %51, %85 : vector<256x32xf32>
    %c0_37 = arith.constant 0 : index
    %c0_38 = arith.constant 0 : index
    %87 = vector.load %arg13[%c0_37, %c0_38] : memref<256x32xf32, #tpu.memory_space<vmem>>, vector<256x32xf32>
    tpu.vector_store %arg13[%c0_37, %c0_38], %86 {strides = array<i32>} : memref<256x32xf32, #tpu.memory_space<vmem>>, vector<256x32xf32>,
    %c0_39 = arith.constant 0 : index
    %c0_40 = arith.constant 0 : index
    %88 = vector.load %arg14[%c0_39, %c0_40] : memref<256x32xf32, #tpu.memory_space<vmem>>, vector<256x32xf32>
    tpu.vector_store %arg14[%c0_39, %c0_40], %85 {strides = array<i32>} : memref<256x32xf32, #tpu.memory_space<vmem>>, vector<256x32xf32>,
    return
  }
  func.func @transform_0(%arg0: i32) -> (i32, i32) {
    %c0_i32 = arith.constant 0 : i32
    %c0_i32_0 = arith.constant 0 : i32
    return %arg0, %c0_i32 : i32, i32
  }
  func.func @transform_1(%arg0: i32) -> (i32, i32) {
    %c0_i32 = arith.constant 0 : i32
    %c0_i32_0 = arith.constant 0 : i32
    return %arg0, %c0_i32 : i32, i32
  }
  func.func @transform_2(%arg0: i32) -> (i32, i32) {
    %c0_i32 = arith.constant 0 : i32
    %c0_i32_0 = arith.constant 0 : i32
    return %arg0, %c0_i32 : i32, i32
  }
  func.func @transform_3(%arg0: i32) -> (i32, i32) {
    %c0_i32 = arith.constant 0 : i32
    %c0_i32_0 = arith.constant 0 : i32
    %c0_i32_1 = arith.constant 0 : i32
    return %c0_i32, %c0_i32_0 : i32, i32
  }
  func.func @transform_4(%arg0: i32) -> (i32, i32) {
    %c0_i32 = arith.constant 0 : i32
    %c0_i32_0 = arith.constant 0 : i32
    %c0_i32_1 = arith.constant 0 : i32
    return %c0_i32, %c0_i32_0 : i32, i32
  }
  func.func @transform_5(%arg0: i32) -> (i32, i32) {
    %c0_i32 = arith.constant 0 : i32
    %c0_i32_0 = arith.constant 0 : i32
    %c0_i32_1 = arith.constant 0 : i32
    return %c0_i32, %c0_i32_0 : i32, i32
  }
  func.func @transform_6(%arg0: i32) -> (i32, i32) {
    %c0_i32 = arith.constant 0 : i32
    %c0_i32_0 = arith.constant 0 : i32
    %c0_i32_1 = arith.constant 0 : i32
    return %c0_i32, %c0_i32_0 : i32, i32
  }
  func.func @transform_7(%arg0: i32) -> (i32, i32) {
    %c0_i32 = arith.constant 0 : i32
    %c0_i32_0 = arith.constant 0 : i32
    %c0_i32_1 = arith.constant 0 : i32
    return %c0_i32, %c0_i32_0 : i32, i32
  }
  func.func @transform_8(%arg0: i32) -> (i32, i32) {
    %c0_i32 = arith.constant 0 : i32
    %c0_i32_0 = arith.constant 0 : i32
    %c0_i32_1 = arith.constant 0 : i32
    return %c0_i32, %c0_i32_0 : i32, i32
  }
  func.func @transform_9(%arg0: i32) -> (i32, i32) {
    %c0_i32 = arith.constant 0 : i32
    %c0_i32_0 = arith.constant 0 : i32
    %c0_i32_1 = arith.constant 0 : i32
    return %c0_i32, %c0_i32_0 : i32, i32
  }
  func.func @transform_10(%arg0: i32) -> (i32, i32) {
    %c0_i32 = arith.constant 0 : i32
    %c0_i32_0 = arith.constant 0 : i32
    %c0_i32_1 = arith.constant 0 : i32
    return %c0_i32, %c0_i32_0 : i32, i32
  }
  func.func @transform_11(%arg0: i32) -> (i32, i32) {
    %c0_i32 = arith.constant 0 : i32
    %c0_i32_0 = arith.constant 0 : i32
    %c0_i32_1 = arith.constant 0 : i32
    return %c0_i32, %c0_i32_0 : i32, i32
  }
  func.func @transform_12(%arg0: i32) -> (i32, i32) {
    %c0_i32 = arith.constant 0 : i32
    %c0_i32_0 = arith.constant 0 : i32
    return %arg0, %c0_i32 : i32, i32
  }
  func.func @transform_13(%arg0: i32) -> (i32, i32) {
    %c0_i32 = arith.constant 0 : i32
    %c0_i32_0 = arith.constant 0 : i32
    return %arg0, %c0_i32 : i32, i32
  }
}

</mosaic_0001>

<llo_original>
// kernel: tpu_custom_call.1
$region0: #{tpu_custom_call.1}
  #allocation0 [shape = 'u32[]', space=smem, size = 0x4, offset = 0x4, fixed_abs, tag = 'smem constant byte address 0x4 - core index']
  #allocation1 [shape = 'u32[144,128]{1,0:T(1,128)}', space=vmem, size = 0x12000, scoped, tag = 'internal scratch']
  %s0 = inlined_call_operand.vmem [shape: f32[256,32], index: 0, kind: input, shape index: {}]
  %s1 = inlined_call_operand.vmem [shape: f32[256,32], index: 1, kind: input, shape index: {}]
  %s2 = inlined_call_operand.vmem [shape: f32[256,32], index: 2, kind: input, shape index: {}]
  %s3 = inlined_call_operand.vmem [shape: f32[32,256], index: 3, kind: input, shape index: {}]
  %s4 = inlined_call_operand.vmem [shape: f32[32,256], index: 4, kind: input, shape index: {}]
  %s5 = inlined_call_operand.vmem [shape: f32[1,256], index: 5, kind: input, shape index: {}]
  %s6 = inlined_call_operand.vmem [shape: f32[1,128], index: 6, kind: input, shape index: {}]
  %s7 = inlined_call_operand.vmem [shape: f32[1,128], index: 7, kind: input, shape index: {}]
  %s8 = inlined_call_operand.vmem [shape: f32[1,128], index: 8, kind: input, shape index: {}]
  %s9 = inlined_call_operand.vmem [shape: f32[1,128], index: 9, kind: input, shape index: {}]
  %s10 = inlined_call_operand.vmem [shape: f32[128,32], index: 10, kind: input, shape index: {}]
  %s11 = inlined_call_operand.vmem [shape: f32[1,32], index: 11, kind: input, shape index: {}]
  %s12 = inlined_call_operand.vmem [shape: f32[256,32], index: 12, kind: output, shape index: {0}]
  %s13 = inlined_call_operand.vmem [shape: f32[256,32], index: 13, kind: output, shape index: {1}]
  %14 = xla_tuple %s12, %s13
  %s15 = sld [smem:[#allocation0]]
  $region66: #{tpu_custom_call.1} parent=0
    _
  %s17 = ssub.s32 1, %s15
  %s18 = scalar_select 0, %s17, %s15
  // Predicated region
  $region2: #{tpu_custom_call.1} parent=0 // pred_check
    _
  $region3: #{tpu_custom_call.1} parent=0 // pred_check_branch
    %20 = sbr.rel (0) target = $region5
  $region4: #{tpu_custom_call.1} parent=0 // pred_region
    _
  $region5: #{tpu_custom_call.1} parent=0 // pred_fallthru
    _
  // Predicated region
  $region6: #{tpu_custom_call.1} parent=0 // pred_check
    _
  $region7: #{tpu_custom_call.1} parent=0 // pred_check_branch
    %22 = sbr.rel (0) target = $region9
  $region8: #{tpu_custom_call.1} parent=0 // pred_region
    _
  $region9: #{tpu_custom_call.1} parent=0 // pred_fallthru
    _
  // Predicated region
  $region10: #{tpu_custom_call.1} parent=0 // pred_check
    _
  $region11: #{tpu_custom_call.1} parent=0 // pred_check_branch
    %24 = sbr.rel (0) target = $region13
  $region12: #{tpu_custom_call.1} parent=0 // pred_region
    _
  $region13: #{tpu_custom_call.1} parent=0 // pred_fallthru
    _
  // Predicated region
  $region14: #{tpu_custom_call.1} parent=0 // pred_check
    _
  $region15: #{tpu_custom_call.1} parent=0 // pred_check_branch
    %26 = sbr.rel (0) target = $region17
  $region16: #{tpu_custom_call.1} parent=0 // pred_region
    _
  $region17: #{tpu_custom_call.1} parent=0 // pred_fallthru
    _
  // Predicated region
  $region18: #{tpu_custom_call.1} parent=0 // pred_check
    _
  $region19: #{tpu_custom_call.1} parent=0 // pred_check_branch
    %28 = sbr.rel (0) target = $region21
  $region20: #{tpu_custom_call.1} parent=0 // pred_region
    _
  $region21: #{tpu_custom_call.1} parent=0 // pred_fallthru
    _
  // Predicated region
  $region22: #{tpu_custom_call.1} parent=0 // pred_check
    _
  $region23: #{tpu_custom_call.1} parent=0 // pred_check_branch
    %30 = sbr.rel (0) target = $region25
  $region24: #{tpu_custom_call.1} parent=0 // pred_region
    _
  $region25: #{tpu_custom_call.1} parent=0 // pred_fallthru
    _
  // Predicated region
  $region26: #{tpu_custom_call.1} parent=0 // pred_check
    _
  $region27: #{tpu_custom_call.1} parent=0 // pred_check_branch
    %32 = sbr.rel (0) target = $region29
  $region28: #{tpu_custom_call.1} parent=0 // pred_region
    _
  $region29: #{tpu_custom_call.1} parent=0 // pred_fallthru
    _
  // Predicated region
  $region30: #{tpu_custom_call.1} parent=0 // pred_check
    _
  $region31: #{tpu_custom_call.1} parent=0 // pred_check_branch
    %34 = sbr.rel (0) target = $region33
  $region32: #{tpu_custom_call.1} parent=0 // pred_region
    _
  $region33: #{tpu_custom_call.1} parent=0 // pred_fallthru
    _
  // Predicated region
  $region34: #{tpu_custom_call.1} parent=0 // pred_check
    _
  $region35: #{tpu_custom_call.1} parent=0 // pred_check_branch
    %36 = sbr.rel (0) target = $region37
  $region36: #{tpu_custom_call.1} parent=0 // pred_region
    _
  $region37: #{tpu_custom_call.1} parent=0 // pred_fallthru
    _
  // Predicated region
  $region38: #{tpu_custom_call.1} parent=0 // pred_check
    _
  $region39: #{tpu_custom_call.1} parent=0 // pred_check_branch
    %38 = sbr.rel (0) target = $region41
  $region40: #{tpu_custom_call.1} parent=0 // pred_region
    _
  $region41: #{tpu_custom_call.1} parent=0 // pred_fallthru
    _
  // Predicated region
  $region42: #{tpu_custom_call.1} parent=0 // pred_check
    _
  $region43: #{tpu_custom_call.1} parent=0 // pred_check_branch
    %40 = sbr.rel (0) target = $region45
  $region44: #{tpu_custom_call.1} parent=0 // pred_region
    _
  $region45: #{tpu_custom_call.1} parent=0 // pred_fallthru
    _
  // Predicated region
  $region46: #{tpu_custom_call.1} parent=0 // pred_check
    _
  $region47: #{tpu_custom_call.1} parent=0 // pred_check_branch
    %42 = sbr.rel (0) target = $region49
  $region48: #{tpu_custom_call.1} parent=0 // pred_region
    _
  $region49: #{tpu_custom_call.1} parent=0 // pred_fallthru
    _
  %v43 = vld [vmem:[%s0] sm:$0xff]
  %v44 = vld [vmem:[%s0 + $0x8] sm:$0xff]
  %v45 = vld [vmem:[%s0 + $0x10] sm:$0xff]
  %v46 = vld [vmem:[%s0 + $0x18] sm:$0xff]
  %v47 = vld [vmem:[%s0 + $0x20] sm:$0xff]
  %v48 = vld [vmem:[%s0 + $0x28] sm:$0xff]
  %v49 = vld [vmem:[%s0 + $0x30] sm:$0xff]
  %v50 = vld [vmem:[%s0 + $0x38] sm:$0xff]
  %v51 = vld [vmem:[%s0 + $0x40] sm:$0xff]
  %v52 = vld [vmem:[%s0 + $0x48] sm:$0xff]
  %v53 = vld [vmem:[%s0 + $0x50] sm:$0xff]
  %v54 = vld [vmem:[%s0 + $0x58] sm:$0xff]
  %v55 = vld [vmem:[%s0 + $0x60] sm:$0xff]
  %v56 = vld [vmem:[%s0 + $0x68] sm:$0xff]
  %v57 = vld [vmem:[%s0 + $0x70] sm:$0xff]
  %v58 = vld [vmem:[%s0 + $0x78] sm:$0xff]
  %v59 = vld [vmem:[%s0 + $0x80] sm:$0xff]
  %v60 = vld [vmem:[%s0 + $0x88] sm:$0xff]
  %v61 = vld [vmem:[%s0 + $0x90] sm:$0xff]
  %v62 = vld [vmem:[%s0 + $0x98] sm:$0xff]
  %v63 = vld [vmem:[%s0 + $0xa0] sm:$0xff]
  %v64 = vld [vmem:[%s0 + $0xa8] sm:$0xff]
  %v65 = vld [vmem:[%s0 + $0xb0] sm:$0xff]
  %v66 = vld [vmem:[%s0 + $0xb8] sm:$0xff]
  %v67 = vld [vmem:[%s0 + $0xc0] sm:$0xff]
  %v68 = vld [vmem:[%s0 + $0xc8] sm:$0xff]
  %v69 = vld [vmem:[%s0 + $0xd0] sm:$0xff]
  %v70 = vld [vmem:[%s0 + $0xd8] sm:$0xff]
  %v71 = vld [vmem:[%s0 + $0xe0] sm:$0xff]
  %v72 = vld [vmem:[%s0 + $0xe8] sm:$0xff]
  %v73 = vld [vmem:[%s0 + $0xf0] sm:$0xff]
  %v74 = vld [vmem:[%s0 + $0xf8] sm:$0xff]
  %v75 = vld [vmem:[%s1] sm:$0xff]
  %v76 = vld [vmem:[%s1 + $0x8] sm:$0xff]
  %v77 = vld [vmem:[%s1 + $0x10] sm:$0xff]
  %v78 = vld [vmem:[%s1 + $0x18] sm:$0xff]
  %v79 = vld [vmem:[%s1 + $0x20] sm:$0xff]
  %v80 = vld [vmem:[%s1 + $0x28] sm:$0xff]
  %v81 = vld [vmem:[%s1 + $0x30] sm:$0xff]
  %v82 = vld [vmem:[%s1 + $0x38] sm:$0xff]
  %v83 = vld [vmem:[%s1 + $0x40] sm:$0xff]
  %v84 = vld [vmem:[%s1 + $0x48] sm:$0xff]
  %v85 = vld [vmem:[%s1 + $0x50] sm:$0xff]
  %v86 = vld [vmem:[%s1 + $0x58] sm:$0xff]
  %v87 = vld [vmem:[%s1 + $0x60] sm:$0xff]
  %v88 = vld [vmem:[%s1 + $0x68] sm:$0xff]
  %v89 = vld [vmem:[%s1 + $0x70] sm:$0xff]
  %v90 = vld [vmem:[%s1 + $0x78] sm:$0xff]
  %v91 = vld [vmem:[%s1 + $0x80] sm:$0xff]
  %v92 = vld [vmem:[%s1 + $0x88] sm:$0xff]
  %v93 = vld [vmem:[%s1 + $0x90] sm:$0xff]
  %v94 = vld [vmem:[%s1 + $0x98] sm:$0xff]
  %v95 = vld [vmem:[%s1 + $0xa0] sm:$0xff]
  %v96 = vld [vmem:[%s1 + $0xa8] sm:$0xff]
  %v97 = vld [vmem:[%s1 + $0xb0] sm:$0xff]
  %v98 = vld [vmem:[%s1 + $0xb8] sm:$0xff]
  %v99 = vld [vmem:[%s1 + $0xc0] sm:$0xff]
  %v100 = vld [vmem:[%s1 + $0xc8] sm:$0xff]
  %v101 = vld [vmem:[%s1 + $0xd0] sm:$0xff]
  %v102 = vld [vmem:[%s1 + $0xd8] sm:$0xff]
  %v103 = vld [vmem:[%s1 + $0xe0] sm:$0xff]
  %v104 = vld [vmem:[%s1 + $0xe8] sm:$0xff]
  %v105 = vld [vmem:[%s1 + $0xf0] sm:$0xff]
  %v106 = vld [vmem:[%s1 + $0xf8] sm:$0xff]
  %v107 = vld [vmem:[%s2] sm:$0xff]
  %v108 = vld [vmem:[%s2 + $0x8] sm:$0xff]
  %v109 = vld [vmem:[%s2 + $0x10] sm:$0xff]
  %v110 = vld [vmem:[%s2 + $0x18] sm:$0xff]
  %v111 = vld [vmem:[%s2 + $0x20] sm:$0xff]
  %v112 = vld [vmem:[%s2 + $0x28] sm:$0xff]
  %v113 = vld [vmem:[%s2 + $0x30] sm:$0xff]
  %v114 = vld [vmem:[%s2 + $0x38] sm:$0xff]
  %v115 = vld [vmem:[%s2 + $0x40] sm:$0xff]
  %v116 = vld [vmem:[%s2 + $0x48] sm:$0xff]
  %v117 = vld [vmem:[%s2 + $0x50] sm:$0xff]
  %v118 = vld [vmem:[%s2 + $0x58] sm:$0xff]
  %v119 = vld [vmem:[%s2 + $0x60] sm:$0xff]
  %v120 = vld [vmem:[%s2 + $0x68] sm:$0xff]
  %v121 = vld [vmem:[%s2 + $0x70] sm:$0xff]
  %v122 = vld [vmem:[%s2 + $0x78] sm:$0xff]
  %v123 = vld [vmem:[%s2 + $0x80] sm:$0xff]
  %v124 = vld [vmem:[%s2 + $0x88] sm:$0xff]
  %v125 = vld [vmem:[%s2 + $0x90] sm:$0xff]
  %v126 = vld [vmem:[%s2 + $0x98] sm:$0xff]
  %v127 = vld [vmem:[%s2 + $0xa0] sm:$0xff]
  %v128 = vld [vmem:[%s2 + $0xa8] sm:$0xff]
  %v129 = vld [vmem:[%s2 + $0xb0] sm:$0xff]
  %v130 = vld [vmem:[%s2 + $0xb8] sm:$0xff]
  %v131 = vld [vmem:[%s2 + $0xc0] sm:$0xff]
  %v132 = vld [vmem:[%s2 + $0xc8] sm:$0xff]
  %v133 = vld [vmem:[%s2 + $0xd0] sm:$0xff]
  %v134 = vld [vmem:[%s2 + $0xd8] sm:$0xff]
  %v135 = vld [vmem:[%s2 + $0xe0] sm:$0xff]
  %v136 = vld [vmem:[%s2 + $0xe8] sm:$0xff]
  %v137 = vld [vmem:[%s2 + $0xf0] sm:$0xff]
  %v138 = vld [vmem:[%s2 + $0xf8] sm:$0xff]
  %v139 = vld [vmem:[%s3] sm:$0xff]
  %v140 = vld [vmem:[%s3 + $0x8] sm:$0xff]
  %v141 = vld [vmem:[%s3 + $0x10] sm:$0xff]
  %v142 = vld [vmem:[%s3 + $0x18] sm:$0xff]
  %v143 = vld [vmem:[%s3 + $0x20] sm:$0xff]
  %v144 = vld [vmem:[%s3 + $0x28] sm:$0xff]
  %v145 = vld [vmem:[%s3 + $0x30] sm:$0xff]
  %v146 = vld [vmem:[%s3 + $0x38] sm:$0xff]
  %v147 = vld [vmem:[%s4] sm:$0xff]
  %v148 = vld [vmem:[%s4 + $0x8] sm:$0xff]
  %v149 = vld [vmem:[%s4 + $0x10] sm:$0xff]
  %v150 = vld [vmem:[%s4 + $0x18] sm:$0xff]
  %v151 = vld [vmem:[%s4 + $0x20] sm:$0xff]
  %v152 = vld [vmem:[%s4 + $0x28] sm:$0xff]
  %v153 = vld [vmem:[%s4 + $0x30] sm:$0xff]
  %v154 = vld [vmem:[%s4 + $0x38] sm:$0xff]
  %vm155 = vcmask 261120
  %v157 = vsel %vm155, %v75, 0
  %v160 = vsel %vm155, %v76, 0
  %v163 = vsel %vm155, %v77, 0
  %v166 = vsel %vm155, %v78, 0
  %v169 = vsel %vm155, %v79, 0
  %v172 = vsel %vm155, %v80, 0
  %v175 = vsel %vm155, %v81, 0
  %v178 = vsel %vm155, %v82, 0
  %v181 = vsel %vm155, %v83, 0
  %v184 = vsel %vm155, %v84, 0
  %v187 = vsel %vm155, %v85, 0
  %v190 = vsel %vm155, %v86, 0
  %v193 = vsel %vm155, %v87, 0
  %v196 = vsel %vm155, %v88, 0
  %v199 = vsel %vm155, %v89, 0
  %v202 = vsel %vm155, %v90, 0
  %v205 = vsel %vm155, %v91, 0
  %v208 = vsel %vm155, %v92, 0
  %v211 = vsel %vm155, %v93, 0
  %v214 = vsel %vm155, %v94, 0
  %v217 = vsel %vm155, %v95, 0
  %v220 = vsel %vm155, %v96, 0
  %v223 = vsel %vm155, %v97, 0
  %v226 = vsel %vm155, %v98, 0
  %v229 = vsel %vm155, %v99, 0
  %v232 = vsel %vm155, %v100, 0
  %v235 = vsel %vm155, %v101, 0
  %v238 = vsel %vm155, %v102, 0
  %v241 = vsel %vm155, %v103, 0
  %v244 = vsel %vm155, %v104, 0
  %v247 = vsel %vm155, %v105, 0
  %v250 = vsel %vm155, %v106, 0
  %252 = vmatprep.subr.mxu0 0.0
  %253 = vmatpush1.msra.mxu0 0.0
  %254 = vmatprep.subr.mxu0 0.0
  %255 = vmatpush1.msra.mxu0 0.0
  %256 = vmatprep.subr.mxu0 0.0
  %257 = vmatpush1.msra.mxu0 0.0
  %258 = vmatprep.subr.mxu0 0.0
  %259 = vmatpush1.msra.mxu0 0.0
  %260 = vmatprep.subr.mxu0 0.0
  %261 = vmatpush1.msra.mxu0 0.0
  %262 = vmatprep.subr.mxu0 0.0
  %263 = vmatpush1.msra.mxu0 0.0
  %264 = vmatprep.subr.mxu0 0.0
  %265 = vmatpush1.msra.mxu0 0.0
  %266 = vmatprep.subr.mxu0 0.0
  %267 = vmatpush1.msra.mxu0 0.0
  %268 = vmatprep.subr.mxu0 0.0
  %269 = vmatpush1.msra.mxu0 0.0
  %270 = vmatprep.subr.mxu0 0.0
  %271 = vmatpush1.msra.mxu0 0.0
  %272 = vmatprep.subr.mxu0 0.0
  %273 = vmatpush1.msra.mxu0 0.0
  %274 = vmatprep.subr.mxu0 0.0
  %275 = vmatpush1.msra.mxu0 0.0
  %276 = vmatprep.subr.mxu0 %v154
  %277 = vmatpush1.msra.mxu0 %v153
  %278 = vmatprep.subr.mxu0 %v152
  %279 = vmatpush1.msra.mxu0 %v151
  %280 = vmatprep.subr.mxu0 %v150
  %281 = vmatpush1.msra.mxu0 %v149
  %282 = vmatprep.subr.mxu0 %v148
  %283 = vmatpush1.msra.mxu0 %v147
  %284 = vmatprep.subr.mxu0 0.0
  %285 = vmatpush2.msra.mxu0 0.0
  %286 = vmatprep.subr.mxu0 0.0
  %287 = vmatpush2.msra.mxu0 0.0
  %288 = vmatprep.subr.mxu0 0.0
  %289 = vmatpush2.msra.mxu0 0.0
  %290 = vmatprep.subr.mxu0 0.0
  %291 = vmatpush2.msra.mxu0 0.0
  %292 = vmatprep.subr.mxu0 0.0
  %293 = vmatpush2.msra.mxu0 0.0
  %294 = vmatprep.subr.mxu0 0.0
  %295 = vmatpush2.msra.mxu0 0.0
  %296 = vmatprep.subr.mxu0 0.0
  %297 = vmatpush2.msra.mxu0 0.0
  %298 = vmatprep.subr.mxu0 0.0
  %299 = vmatpush2.msra.mxu0 0.0
  %300 = vmatprep.subr.mxu0 0.0
  %301 = vmatpush2.msra.mxu0 0.0
  %302 = vmatprep.subr.mxu0 0.0
  %303 = vmatpush2.msra.mxu0 0.0
  %304 = vmatprep.subr.mxu0 0.0
  %305 = vmatpush2.msra.mxu0 0.0
  %306 = vmatprep.subr.mxu0 0.0
  %307 = vmatpush2.msra.mxu0 0.0
  %308 = vmatprep.subr.mxu0 0.0
  %309 = vmatpush2.msra.mxu0 0.0
  %310 = vmatprep.subr.mxu0 0.0
  %311 = vmatpush2.msra.mxu0 0.0
  %312 = vmatprep.subr.mxu0 0.0
  %313 = vmatpush2.msra.mxu0 0.0
  %314 = vmatprep.subr.mxu0 0.0
  %315 = vmatpush2.msra.mxu0 0.0
  %316 = vmatprep.mubr.f32.mxu0 0.0
  %317 = vmatmul.mubr.f32.gmra.mxu0 %v157
  %v318 = vpop.f32.mrf.mxu0
  %v319 = vadd.f32 0.0, %v318
  %v320 = vpop.f32.mrf.mxu0
  %v321 = vadd.f32 0.0, %v320
  %322 = vmatprep.mubr.f32.mxu0 0.0
  %323 = vmatmul.mubr.f32.gmra.mxu0 %v160
  %v324 = vpop.f32.mrf.mxu0
  %v325 = vadd.f32 0.0, %v324
  %v326 = vpop.f32.mrf.mxu0
  %v327 = vadd.f32 0.0, %v326
  %328 = vmatprep.mubr.f32.mxu0 0.0
  %329 = vmatmul.mubr.f32.gmra.mxu0 %v163
  %v330 = vpop.f32.mrf.mxu0
  %v331 = vadd.f32 0.0, %v330
  %v332 = vpop.f32.mrf.mxu0
  %v333 = vadd.f32 0.0, %v332
  %334 = vmatprep.mubr.f32.mxu0 0.0
  %335 = vmatmul.mubr.f32.gmra.mxu0 %v166
  %v336 = vpop.f32.mrf.mxu0
  %v337 = vadd.f32 0.0, %v336
  %v338 = vpop.f32.mrf.mxu0
  %v339 = vadd.f32 0.0, %v338
  %340 = vmatprep.mubr.f32.mxu0 0.0
  %341 = vmatmul.mubr.f32.gmra.mxu0 %v169
  %v342 = vpop.f32.mrf.mxu0
  %v343 = vadd.f32 0.0, %v342
  %v344 = vpop.f32.mrf.mxu0
  %v345 = vadd.f32 0.0, %v344
  %346 = vmatprep.mubr.f32.mxu0 0.0
  %347 = vmatmul.mubr.f32.gmra.mxu0 %v172
  %v348 = vpop.f32.mrf.mxu0
  %v349 = vadd.f32 0.0, %v348
  %v350 = vpop.f32.mrf.mxu0
  %v351 = vadd.f32 0.0, %v350
  %352 = vmatprep.mubr.f32.mxu0 0.0
  %353 = vmatmul.mubr.f32.gmra.mxu0 %v175
  %v354 = vpop.f32.mrf.mxu0
  %v355 = vadd.f32 0.0, %v354
  %v356 = vpop.f32.mrf.mxu0
  %v357 = vadd.f32 0.0, %v356
  %358 = vmatprep.mubr.f32.mxu0 0.0
  %359 = vmatmul.mubr.f32.gmra.mxu0 %v178
  %v360 = vpop.f32.mrf.mxu0
  %v361 = vadd.f32 0.0, %v360
  %v362 = vpop.f32.mrf.mxu0
  %v363 = vadd.f32 0.0, %v362
  %364 = vmatprep.mubr.f32.mxu0 0.0
  %365 = vmatmul.mubr.f32.gmra.mxu0 %v181
  %v366 = vpop.f32.mrf.mxu0
  %v367 = vadd.f32 0.0, %v366
  %v368 = vpop.f32.mrf.mxu0
  %v369 = vadd.f32 0.0, %v368
  %370 = vmatprep.mubr.f32.mxu0 0.0
  %371 = vmatmul.mubr.f32.gmra.mxu0 %v184
  %v372 = vpop.f32.mrf.mxu0
  %v373 = vadd.f32 0.0, %v372
  %v374 = vpop.f32.mrf.mxu0
  %v375 = vadd.f32 0.0, %v374
  %376 = vmatprep.mubr.f32.mxu0 0.0
  %377 = vmatmul.mubr.f32.gmra.mxu0 %v187
  %v378 = vpop.f32.mrf.mxu0
  %v379 = vadd.f32 0.0, %v378
  %v380 = vpop.f32.mrf.mxu0
  %v381 = vadd.f32 0.0, %v380
  %382 = vmatprep.mubr.f32.mxu0 0.0
  %383 = vmatmul.mubr.f32.gmra.mxu0 %v190
  %v384 = vpop.f32.mrf.mxu0
  %v385 = vadd.f32 0.0, %v384
  %v386 = vpop.f32.mrf.mxu0
  %v387 = vadd.f32 0.0, %v386
  %388 = vmatprep.mubr.f32.mxu0 0.0
  %389 = vmatmul.mubr.f32.gmra.mxu0 %v193
  %v390 = vpop.f32.mrf.mxu0
  %v391 = vadd.f32 0.0, %v390
  %v392 = vpop.f32.mrf.mxu0
  %v393 = vadd.f32 0.0, %v392
  %394 = vmatprep.mubr.f32.mxu0 0.0
  %395 = vmatmul.mubr.f32.gmra.mxu0 %v196
  %v396 = vpop.f32.mrf.mxu0
  %v397 = vadd.f32 0.0, %v396
  %v398 = vpop.f32.mrf.mxu0
  %v399 = vadd.f32 0.0, %v398
  %400 = vmatprep.mubr.f32.mxu0 0.0
  %401 = vmatmul.mubr.f32.gmra.mxu0 %v199
  %v402 = vpop.f32.mrf.mxu0
  %v403 = vadd.f32 0.0, %v402
  %v404 = vpop.f32.mrf.mxu0
  %v405 = vadd.f32 0.0, %v404
  %406 = vmatprep.mubr.f32.mxu0 0.0
  %407 = vmatmul.mubr.f32.gmra.mxu0 %v202
  %v408 = vpop.f32.mrf.mxu0
  %v409 = vadd.f32 0.0, %v408
  %v410 = vpop.f32.mrf.mxu0
  %v411 = vadd.f32 0.0, %v410
  %412 = vmatprep.mubr.f32.mxu0 0.0
  %413 = vmatmul.mubr.f32.gmra.mxu0 %v205
  %v414 = vpop.f32.mrf.mxu0
  %v415 = vadd.f32 0.0, %v414
  %v416 = vpop.f32.mrf.mxu0
  %v417 = vadd.f32 0.0, %v416
  %418 = vmatprep.mubr.f32.mxu0 0.0
  %419 = vmatmul.mubr.f32.gmra.mxu0 %v208
  %v420 = vpop.f32.mrf.mxu0
  %v421 = vadd.f32 0.0, %v420
  %v422 = vpop.f32.mrf.mxu0
  %v423 = vadd.f32 0.0, %v422
  %424 = vmatprep.mubr.f32.mxu0 0.0
  %425 = vmatmul.mubr.f32.gmra.mxu0 %v211
  %v426 = vpop.f32.mrf.mxu0
  %v427 = vadd.f32 0.0, %v426
  %v428 = vpop.f32.mrf.mxu0
  %v429 = vadd.f32 0.0, %v428
  %430 = vmatprep.mubr.f32.mxu0 0.0
  %431 = vmatmul.mubr.f32.gmra.mxu0 %v214
  %v432 = vpop.f32.mrf.mxu0
  %v433 = vadd.f32 0.0, %v432
  %v434 = vpop.f32.mrf.mxu0
  %v435 = vadd.f32 0.0, %v434
  %436 = vmatprep.mubr.f32.mxu0 0.0
  %437 = vmatmul.mubr.f32.gmra.mxu0 %v217
  %v438 = vpop.f32.mrf.mxu0
  %v439 = vadd.f32 0.0, %v438
  %v440 = vpop.f32.mrf.mxu0
  %v441 = vadd.f32 0.0, %v440
  %442 = vmatprep.mubr.f32.mxu0 0.0
  %443 = vmatmul.mubr.f32.gmra.mxu0 %v220
  %v444 = vpop.f32.mrf.mxu0
  %v445 = vadd.f32 0.0, %v444
  %v446 = vpop.f32.mrf.mxu0
  %v447 = vadd.f32 0.0, %v446
  %448 = vmatprep.mubr.f32.mxu0 0.0
  %449 = vmatmul.mubr.f32.gmra.mxu0 %v223
  %v450 = vpop.f32.mrf.mxu0
  %v451 = vadd.f32 0.0, %v450
  %v452 = vpop.f32.mrf.mxu0
  %v453 = vadd.f32 0.0, %v452
  %454 = vmatprep.mubr.f32.mxu0 0.0
  %455 = vmatmul.mubr.f32.gmra.mxu0 %v226
  %v456 = vpop.f32.mrf.mxu0
  %v457 = vadd.f32 0.0, %v456
  %v458 = vpop.f32.mrf.mxu0
  %v459 = vadd.f32 0.0, %v458
  %460 = vmatprep.mubr.f32.mxu0 0.0
  %461 = vmatmul.mubr.f32.gmra.mxu0 %v229
  %v462 = vpop.f32.mrf.mxu0
  %v463 = vadd.f32 0.0, %v462
  %v464 = vpop.f32.mrf.mxu0
  %v465 = vadd.f32 0.0, %v464
  %466 = vmatprep.mubr.f32.mxu0 0.0
  %467 = vmatmul.mubr.f32.gmra.mxu0 %v232
  %v468 = vpop.f32.mrf.mxu0
  %v469 = vadd.f32 0.0, %v468
  %v470 = vpop.f32.mrf.mxu0
  %v471 = vadd.f32 0.0, %v470
  %472 = vmatprep.mubr.f32.mxu0 0.0
  %473 = vmatmul.mubr.f32.gmra.mxu0 %v235
  %v474 = vpop.f32.mrf.mxu0
  %v475 = vadd.f32 0.0, %v474
  %v476 = vpop.f32.mrf.mxu0
  %v477 = vadd.f32 0.0, %v476
  %478 = vmatprep.mubr.f32.mxu0 0.0
  %479 = vmatmul.mubr.f32.gmra.mxu0 %v238
  %v480 = vpop.f32.mrf.mxu0
  %v481 = vadd.f32 0.0, %v480
  %v482 = vpop.f32.mrf.mxu0
  %v483 = vadd.f32 0.0, %v482
  %484 = vmatprep.mubr.f32.mxu0 0.0
  %485 = vmatmul.mubr.f32.gmra.mxu0 %v241
  %v486 = vpop.f32.mrf.mxu0
  %v487 = vadd.f32 0.0, %v486
  %v488 = vpop.f32.mrf.mxu0
  %v489 = vadd.f32 0.0, %v488
  %490 = vmatprep.mubr.f32.mxu0 0.0
  %491 = vmatmul.mubr.f32.gmra.mxu0 %v244
  %v492 = vpop.f32.mrf.mxu0
  %v493 = vadd.f32 0.0, %v492
  %v494 = vpop.f32.mrf.mxu0
  %v495 = vadd.f32 0.0, %v494
  %496 = vmatprep.mubr.f32.mxu0 0.0
  %497 = vmatmul.mubr.f32.gmra.mxu0 %v247
  %v498 = vpop.f32.mrf.mxu0
  %v499 = vadd.f32 0.0, %v498
  %v500 = vpop.f32.mrf.mxu0
  %v501 = vadd.f32 0.0, %v500
  %502 = vmatprep.mubr.f32.mxu0 0.0
  %503 = vmatmul.mubr.f32.gmra.mxu0 %v250
  %v504 = vpop.f32.mrf.mxu0
  %v505 = vadd.f32 0.0, %v504
  %v506 = vpop.f32.mrf.mxu0
  %v507 = vadd.f32 0.0, %v506
  %508 = vdwg.mxu0
  %v510 = vsel %vm155, %v43, 0
  %v513 = vsel %vm155, %v44, 0
  %v516 = vsel %vm155, %v45, 0
  %v519 = vsel %vm155, %v46, 0
  %v522 = vsel %vm155, %v47, 0
  %v525 = vsel %vm155, %v48, 0
  %v528 = vsel %vm155, %v49, 0
  %v531 = vsel %vm155, %v50, 0
  %v534 = vsel %vm155, %v51, 0
  %v537 = vsel %vm155, %v52, 0
  %v540 = vsel %vm155, %v53, 0
  %v543 = vsel %vm155, %v54, 0
  %v546 = vsel %vm155, %v55, 0
  %v549 = vsel %vm155, %v56, 0
  %v552 = vsel %vm155, %v57, 0
  %v555 = vsel %vm155, %v58, 0
  %v558 = vsel %vm155, %v59, 0
  %v561 = vsel %vm155, %v60, 0
  %v564 = vsel %vm155, %v61, 0
  %v567 = vsel %vm155, %v62, 0
  %v570 = vsel %vm155, %v63, 0
  %v573 = vsel %vm155, %v64, 0
  %v576 = vsel %vm155, %v65, 0
  %v579 = vsel %vm155, %v66, 0
  %v582 = vsel %vm155, %v67, 0
  %v585 = vsel %vm155, %v68, 0
  %v588 = vsel %vm155, %v69, 0
  %v591 = vsel %vm155, %v70, 0
  %v594 = vsel %vm155, %v71, 0
  %v597 = vsel %vm155, %v72, 0
  %v600 = vsel %vm155, %v73, 0
  %v603 = vsel %vm155, %v74, 0
  %605 = vmatprep.subr.mxu0 0.0
  %606 = vmatpush1.msra.mxu0 0.0
  %607 = vmatprep.subr.mxu0 0.0
  %608 = vmatpush1.msra.mxu0 0.0
  %609 = vmatprep.subr.mxu0 0.0
  %610 = vmatpush1.msra.mxu0 0.0
  %611 = vmatprep.subr.mxu0 0.0
  %612 = vmatpush1.msra.mxu0 0.0
  %613 = vmatprep.subr.mxu0 0.0
  %614 = vmatpush1.msra.mxu0 0.0
  %615 = vmatprep.subr.mxu0 0.0
  %616 = vmatpush1.msra.mxu0 0.0
  %617 = vmatprep.subr.mxu0 0.0
  %618 = vmatpush1.msra.mxu0 0.0
  %619 = vmatprep.subr.mxu0 0.0
  %620 = vmatpush1.msra.mxu0 0.0
  %621 = vmatprep.subr.mxu0 0.0
  %622 = vmatpush1.msra.mxu0 0.0
  %623 = vmatprep.subr.mxu0 0.0
  %624 = vmatpush1.msra.mxu0 0.0
  %625 = vmatprep.subr.mxu0 0.0
  %626 = vmatpush1.msra.mxu0 0.0
  %627 = vmatprep.subr.mxu0 0.0
  %628 = vmatpush1.msra.mxu0 0.0
  %629 = vmatprep.subr.mxu0 %v146
  %630 = vmatpush1.msra.mxu0 %v145
  %631 = vmatprep.subr.mxu0 %v144
  %632 = vmatpush1.msra.mxu0 %v143
  %633 = vmatprep.subr.mxu0 %v142
  %634 = vmatpush1.msra.mxu0 %v141
  %635 = vmatprep.subr.mxu0 %v140
  %636 = vmatpush1.msra.mxu0 %v139
  %637 = vmatprep.subr.mxu0 0.0
  %638 = vmatpush2.msra.mxu0 0.0
  %639 = vmatprep.subr.mxu0 0.0
  %640 = vmatpush2.msra.mxu0 0.0
  %641 = vmatprep.subr.mxu0 0.0
  %642 = vmatpush2.msra.mxu0 0.0
  %643 = vmatprep.subr.mxu0 0.0
  %644 = vmatpush2.msra.mxu0 0.0
  %645 = vmatprep.subr.mxu0 0.0
  %646 = vmatpush2.msra.mxu0 0.0
  %647 = vmatprep.subr.mxu0 0.0
  %648 = vmatpush2.msra.mxu0 0.0
  %649 = vmatprep.subr.mxu0 0.0
  %650 = vmatpush2.msra.mxu0 0.0
  %651 = vmatprep.subr.mxu0 0.0
  %652 = vmatpush2.msra.mxu0 0.0
  %653 = vmatprep.subr.mxu0 0.0
  %654 = vmatpush2.msra.mxu0 0.0
  %655 = vmatprep.subr.mxu0 0.0
  %656 = vmatpush2.msra.mxu0 0.0
  %657 = vmatprep.subr.mxu0 0.0
  %658 = vmatpush2.msra.mxu0 0.0
  %659 = vmatprep.subr.mxu0 0.0
  %660 = vmatpush2.msra.mxu0 0.0
  %661 = vmatprep.subr.mxu0 0.0
  %662 = vmatpush2.msra.mxu0 0.0
  %663 = vmatprep.subr.mxu0 0.0
  %664 = vmatpush2.msra.mxu0 0.0
  %665 = vmatprep.subr.mxu0 0.0
  %666 = vmatpush2.msra.mxu0 0.0
  %667 = vmatprep.subr.mxu0 0.0
  %668 = vmatpush2.msra.mxu0 0.0
  %669 = vmatprep.mubr.f32.mxu0 0.0
  %670 = vmatmul.mubr.f32.gmra.mxu0 %v510
  %v671 = vpop.f32.mrf.mxu0
  %v672 = vadd.f32 %v319, %v671
  %v673 = vpop.f32.mrf.mxu0
  %v674 = vadd.f32 %v321, %v673
  %675 = vmatprep.mubr.f32.mxu0 0.0
  %676 = vmatmul.mubr.f32.gmra.mxu0 %v513
  %v677 = vpop.f32.mrf.mxu0
  %v678 = vadd.f32 %v325, %v677
  %v679 = vpop.f32.mrf.mxu0
  %v680 = vadd.f32 %v327, %v679
  %681 = vmatprep.mubr.f32.mxu0 0.0
  %682 = vmatmul.mubr.f32.gmra.mxu0 %v516
  %v683 = vpop.f32.mrf.mxu0
  %v684 = vadd.f32 %v331, %v683
  %v685 = vpop.f32.mrf.mxu0
  %v686 = vadd.f32 %v333, %v685
  %687 = vmatprep.mubr.f32.mxu0 0.0
  %688 = vmatmul.mubr.f32.gmra.mxu0 %v519
  %v689 = vpop.f32.mrf.mxu0
  %v690 = vadd.f32 %v337, %v689
  %v691 = vpop.f32.mrf.mxu0
  %v692 = vadd.f32 %v339, %v691
  %693 = vmatprep.mubr.f32.mxu0 0.0
  %694 = vmatmul.mubr.f32.gmra.mxu0 %v522
  %v695 = vpop.f32.mrf.mxu0
  %v696 = vadd.f32 %v343, %v695
  %v697 = vpop.f32.mrf.mxu0
  %v698 = vadd.f32 %v345, %v697
  %699 = vmatprep.mubr.f32.mxu0 0.0
  %700 = vmatmul.mubr.f32.gmra.mxu0 %v525
  %v701 = vpop.f32.mrf.mxu0
  %v702 = vadd.f32 %v349, %v701
  %v703 = vpop.f32.mrf.mxu0
  %v704 = vadd.f32 %v351, %v703
  %705 = vmatprep.mubr.f32.mxu0 0.0
  %706 = vmatmul.mubr.f32.gmra.mxu0 %v528
  %v707 = vpop.f32.mrf.mxu0
  %v708 = vadd.f32 %v355, %v707
  %v709 = vpop.f32.mrf.mxu0
  %v710 = vadd.f32 %v357, %v709
  %711 = vmatprep.mubr.f32.mxu0 0.0
  %712 = vmatmul.mubr.f32.gmra.mxu0 %v531
  %v713 = vpop.f32.mrf.mxu0
  %v714 = vadd.f32 %v361, %v713
  %v715 = vpop.f32.mrf.mxu0
  %v716 = vadd.f32 %v363, %v715
  %717 = vmatprep.mubr.f32.mxu0 0.0
  %718 = vmatmul.mubr.f32.gmra.mxu0 %v534
  %v719 = vpop.f32.mrf.mxu0
  %v720 = vadd.f32 %v367, %v719
  %v721 = vpop.f32.mrf.mxu0
  %v722 = vadd.f32 %v369, %v721
  %723 = vmatprep.mubr.f32.mxu0 0.0
  %724 = vmatmul.mubr.f32.gmra.mxu0 %v537
  %v725 = vpop.f32.mrf.mxu0
  %v726 = vadd.f32 %v373, %v725
  %v727 = vpop.f32.mrf.mxu0
  %v728 = vadd.f32 %v375, %v727
  %729 = vmatprep.mubr.f32.mxu0 0.0
  %730 = vmatmul.mubr.f32.gmra.mxu0 %v540
  %v731 = vpop.f32.mrf.mxu0
  %v732 = vadd.f32 %v379, %v731
  %v733 = vpop.f32.mrf.mxu0
  %v734 = vadd.f32 %v381, %v733
  %735 = vmatprep.mubr.f32.mxu0 0.0
  %736 = vmatmul.mubr.f32.gmra.mxu0 %v543
  %v737 = vpop.f32.mrf.mxu0
  %v738 = vadd.f32 %v385, %v737
  %v739 = vpop.f32.mrf.mxu0
  %v740 = vadd.f32 %v387, %v739
  %741 = vmatprep.mubr.f32.mxu0 0.0
  %742 = vmatmul.mubr.f32.gmra.mxu0 %v546
  %v743 = vpop.f32.mrf.mxu0
  %v744 = vadd.f32 %v391, %v743
  %v745 = vpop.f32.mrf.mxu0
  %v746 = vadd.f32 %v393, %v745
  %747 = vmatprep.mubr.f32.mxu0 0.0
  %748 = vmatmul.mubr.f32.gmra.mxu0 %v549
  %v749 = vpop.f32.mrf.mxu0
  %v750 = vadd.f32 %v397, %v749
  %v751 = vpop.f32.mrf.mxu0
  %v752 = vadd.f32 %v399, %v751
  %753 = vmatprep.mubr.f32.mxu0 0.0
  %754 = vmatmul.mubr.f32.gmra.mxu0 %v552
  %v755 = vpop.f32.mrf.mxu0
  %v756 = vadd.f32 %v403, %v755
  %v757 = vpop.f32.mrf.mxu0
  %v758 = vadd.f32 %v405, %v757
  %759 = vmatprep.mubr.f32.mxu0 0.0
  %760 = vmatmul.mubr.f32.gmra.mxu0 %v555
  %v761 = vpop.f32.mrf.mxu0
  %v762 = vadd.f32 %v409, %v761
  %v763 = vpop.f32.mrf.mxu0
  %v764 = vadd.f32 %v411, %v763
  %765 = vmatprep.mubr.f32.mxu0 0.0
  %766 = vmatmul.mubr.f32.gmra.mxu0 %v558
  %v767 = vpop.f32.mrf.mxu0
  %v768 = vadd.f32 %v415, %v767
  %v769 = vpop.f32.mrf.mxu0
  %v770 = vadd.f32 %v417, %v769
  %771 = vmatprep.mubr.f32.mxu0 0.0
  %772 = vmatmul.mubr.f32.gmra.mxu0 %v561
  %v773 = vpop.f32.mrf.mxu0
  %v774 = vadd.f32 %v421, %v773
  %v775 = vpop.f32.mrf.mxu0
  %v776 = vadd.f32 %v423, %v775
  %777 = vmatprep.mubr.f32.mxu0 0.0
  %778 = vmatmul.mubr.f32.gmra.mxu0 %v564
  %v779 = vpop.f32.mrf.mxu0
  %v780 = vadd.f32 %v427, %v779
  %v781 = vpop.f32.mrf.mxu0
  %v782 = vadd.f32 %v429, %v781
  %783 = vmatprep.mubr.f32.mxu0 0.0
  %784 = vmatmul.mubr.f32.gmra.mxu0 %v567
  %v785 = vpop.f32.mrf.mxu0
  %v786 = vadd.f32 %v433, %v785
  %v787 = vpop.f32.mrf.mxu0
  %v788 = vadd.f32 %v435, %v787
  %789 = vmatprep.mubr.f32.mxu0 0.0
  %790 = vmatmul.mubr.f32.gmra.mxu0 %v570
  %v791 = vpop.f32.mrf.mxu0
  %v792 = vadd.f32 %v439, %v791
  %v793 = vpop.f32.mrf.mxu0
  %v794 = vadd.f32 %v441, %v793
  %795 = vmatprep.mubr.f32.mxu0 0.0
  %796 = vmatmul.mubr.f32.gmra.mxu0 %v573
  %v797 = vpop.f32.mrf.mxu0
  %v798 = vadd.f32 %v445, %v797
  %v799 = vpop.f32.mrf.mxu0
  %v800 = vadd.f32 %v447, %v799
  %801 = vmatprep.mubr.f32.mxu0 0.0
  %802 = vmatmul.mubr.f32.gmra.mxu0 %v576
  %v803 = vpop.f32.mrf.mxu0
  %v804 = vadd.f32 %v451, %v803
  %v805 = vpop.f32.mrf.mxu0
  %v806 = vadd.f32 %v453, %v805
  %807 = vmatprep.mubr.f32.mxu0 0.0
  %808 = vmatmul.mubr.f32.gmra.mxu0 %v579
  %v809 = vpop.f32.mrf.mxu0
  %v810 = vadd.f32 %v457, %v809
  %v811 = vpop.f32.mrf.mxu0
  %v812 = vadd.f32 %v459, %v811
  %813 = vmatprep.mubr.f32.mxu0 0.0
  %814 = vmatmul.mubr.f32.gmra.mxu0 %v582
  %v815 = vpop.f32.mrf.mxu0
  %v816 = vadd.f32 %v463, %v815
  %v817 = vpop.f32.mrf.mxu0
  %v818 = vadd.f32 %v465, %v817
  %819 = vmatprep.mubr.f32.mxu0 0.0
  %820 = vmatmul.mubr.f32.gmra.mxu0 %v585
  %v821 = vpop.f32.mrf.mxu0
  %v822 = vadd.f32 %v469, %v821
  %v823 = vpop.f32.mrf.mxu0
  %v824 = vadd.f32 %v471, %v823
  %825 = vmatprep.mubr.f32.mxu0 0.0
  %826 = vmatmul.mubr.f32.gmra.mxu0 %v588
  %v827 = vpop.f32.mrf.mxu0
  %v828 = vadd.f32 %v475, %v827
  %v829 = vpop.f32.mrf.mxu0
  %v830 = vadd.f32 %v477, %v829
  %831 = vmatprep.mubr.f32.mxu0 0.0
  %832 = vmatmul.mubr.f32.gmra.mxu0 %v591
  %v833 = vpop.f32.mrf.mxu0
  %v834 = vadd.f32 %v481, %v833
  %v835 = vpop.f32.mrf.mxu0
  %v836 = vadd.f32 %v483, %v835
  %837 = vmatprep.mubr.f32.mxu0 0.0
  %838 = vmatmul.mubr.f32.gmra.mxu0 %v594
  %v839 = vpop.f32.mrf.mxu0
  %v840 = vadd.f32 %v487, %v839
  %v841 = vpop.f32.mrf.mxu0
  %v842 = vadd.f32 %v489, %v841
  %843 = vmatprep.mubr.f32.mxu0 0.0
  %844 = vmatmul.mubr.f32.gmra.mxu0 %v597
  %v845 = vpop.f32.mrf.mxu0
  %v846 = vadd.f32 %v493, %v845
  %v847 = vpop.f32.mrf.mxu0
  %v848 = vadd.f32 %v495, %v847
  %849 = vmatprep.mubr.f32.mxu0 0.0
  %850 = vmatmul.mubr.f32.gmra.mxu0 %v600
  %v851 = vpop.f32.mrf.mxu0
  %v852 = vadd.f32 %v499, %v851
  %v853 = vpop.f32.mrf.mxu0
  %v854 = vadd.f32 %v501, %v853
  %855 = vmatprep.mubr.f32.mxu0 0.0
  %856 = vmatmul.mubr.f32.gmra.mxu0 %v603
  %v857 = vpop.f32.mrf.mxu0
  %v858 = vadd.f32 %v505, %v857
  %v859 = vpop.f32.mrf.mxu0
  %v860 = vadd.f32 %v507, %v859
  %861 = vdwg.mxu0
  %v862 = vld [vmem:[%s5] sm:$0x3]
  %v864 = vlaneseq
  %v865 = vshrl.u32 %v864, 7
  %v866 = vsub.s32 0, %v865
  %v867 = vrot.slane %v862, %v866
  %v868 = vlaneseq
  %v869 = vshrl.u32 %v868, 7
  %v870 = vsub.s32 1, %v869
  %v871 = vrot.slane %v862, %v870
  %v874 = vadd.f32 %v672, %v867
  %v875 = vadd.f32 %v674, %v871
  %v876 = vadd.f32 %v678, %v867
  %v877 = vadd.f32 %v680, %v871
  %v878 = vadd.f32 %v684, %v867
  %v879 = vadd.f32 %v686, %v871
  %v880 = vadd.f32 %v690, %v867
  %v881 = vadd.f32 %v692, %v871
  %v882 = vadd.f32 %v696, %v867
  %v883 = vadd.f32 %v698, %v871
  %v884 = vadd.f32 %v702, %v867
  %v885 = vadd.f32 %v704, %v871
  %v886 = vadd.f32 %v708, %v867
  %v887 = vadd.f32 %v710, %v871
  %v888 = vadd.f32 %v714, %v867
  %v889 = vadd.f32 %v716, %v871
  %v890 = vadd.f32 %v720, %v867
  %v891 = vadd.f32 %v722, %v871
  %v892 = vadd.f32 %v726, %v867
  %v893 = vadd.f32 %v728, %v871
  %v894 = vadd.f32 %v732, %v867
  %v895 = vadd.f32 %v734, %v871
  %v896 = vadd.f32 %v738, %v867
  %v897 = vadd.f32 %v740, %v871
  %v898 = vadd.f32 %v744, %v867
  %v899 = vadd.f32 %v746, %v871
  %v900 = vadd.f32 %v750, %v867
  %v901 = vadd.f32 %v752, %v871
  %v902 = vadd.f32 %v756, %v867
  %v903 = vadd.f32 %v758, %v871
  %v904 = vadd.f32 %v762, %v867
  %v905 = vadd.f32 %v764, %v871
  %v906 = vadd.f32 %v768, %v867
  %v907 = vadd.f32 %v770, %v871
  %v908 = vadd.f32 %v774, %v867
  %v909 = vadd.f32 %v776, %v871
  %v910 = vadd.f32 %v780, %v867
  %v911 = vadd.f32 %v782, %v871
  %v912 = vadd.f32 %v786, %v867
  %v913 = vadd.f32 %v788, %v871
  %v914 = vadd.f32 %v792, %v867
  %v915 = vadd.f32 %v794, %v871
  %v916 = vadd.f32 %v798, %v867
  %v917 = vadd.f32 %v800, %v871
  %v918 = vadd.f32 %v804, %v867
  %v919 = vadd.f32 %v806, %v871
  %v920 = vadd.f32 %v810, %v867
  %v921 = vadd.f32 %v812, %v871
  %v922 = vadd.f32 %v816, %v867
  %v923 = vadd.f32 %v818, %v871
  %v924 = vadd.f32 %v822, %v867
  %v925 = vadd.f32 %v824, %v871
  %v926 = vadd.f32 %v828, %v867
  %v927 = vadd.f32 %v830, %v871
  %v928 = vadd.f32 %v834, %v867
  %v929 = vadd.f32 %v836, %v871
  %v930 = vadd.f32 %v840, %v867
  %v931 = vadd.f32 %v842, %v871
  %v932 = vadd.f32 %v846, %v867
  %v933 = vadd.f32 %v848, %v871
  %v934 = vadd.f32 %v852, %v867
  %v935 = vadd.f32 %v854, %v871
  %v936 = vadd.f32 %v858, %v867
  %v937 = vadd.f32 %v860, %v871
  %v938 = vlaneseq
  %v939 = vand.u32 %v938, 127
  %vm940 = vcmp.lt.s32.totalorder %v939, 96
  %v941 = vsel %vm940, 1, 0
  %v942 = vcvt.s32.f32 %v941
  %v943 = vmul.f32 %v874, %v942
  %v944 = vmul.f32 %v876, %v942
  %v945 = vmul.f32 %v878, %v942
  %v946 = vmul.f32 %v880, %v942
  %v947 = vmul.f32 %v882, %v942
  %v948 = vmul.f32 %v884, %v942
  %v949 = vmul.f32 %v886, %v942
  %v950 = vmul.f32 %v888, %v942
  %v951 = vmul.f32 %v890, %v942
  %v952 = vmul.f32 %v892, %v942
  %v953 = vmul.f32 %v894, %v942
  %v954 = vmul.f32 %v896, %v942
  %v955 = vmul.f32 %v898, %v942
  %v956 = vmul.f32 %v900, %v942
  %v957 = vmul.f32 %v902, %v942
  %v958 = vmul.f32 %v904, %v942
  %v959 = vmul.f32 %v906, %v942
  %v960 = vmul.f32 %v908, %v942
  %v961 = vmul.f32 %v910, %v942
  %v962 = vmul.f32 %v912, %v942
  %v963 = vmul.f32 %v914, %v942
  %v964 = vmul.f32 %v916, %v942
  %v965 = vmul.f32 %v918, %v942
  %v966 = vmul.f32 %v920, %v942
  %v967 = vmul.f32 %v922, %v942
  %v968 = vmul.f32 %v924, %v942
  %v969 = vmul.f32 %v926, %v942
  %v970 = vmul.f32 %v928, %v942
  %v971 = vmul.f32 %v930, %v942
  %v972 = vmul.f32 %v932, %v942
  %v973 = vmul.f32 %v934, %v942
  %v974 = vmul.f32 %v936, %v942
  %975 = vadd.xlane.f32.xlu0 %v943
  %v976 = vpop.xlane.xlu0 %975
  %977 = vadd.xlane.f32.xlu0 %v944
  %v978 = vpop.xlane.xlu0 %977
  %979 = vadd.xlane.f32.xlu0 %v945
  %v980 = vpop.xlane.xlu0 %979
  %981 = vadd.xlane.f32.xlu0 %v946
  %v982 = vpop.xlane.xlu0 %981
  %983 = vadd.xlane.f32.xlu0 %v947
  %v984 = vpop.xlane.xlu0 %983
  %985 = vadd.xlane.f32.xlu0 %v948
  %v986 = vpop.xlane.xlu0 %985
  %987 = vadd.xlane.f32.xlu0 %v949
  %v988 = vpop.xlane.xlu0 %987
  %989 = vadd.xlane.f32.xlu0 %v950
  %v990 = vpop.xlane.xlu0 %989
  %991 = vadd.xlane.f32.xlu0 %v951
  %v992 = vpop.xlane.xlu0 %991
  %993 = vadd.xlane.f32.xlu0 %v952
  %v994 = vpop.xlane.xlu0 %993
  %995 = vadd.xlane.f32.xlu0 %v953
  %v996 = vpop.xlane.xlu0 %995
  %997 = vadd.xlane.f32.xlu0 %v954
  %v998 = vpop.xlane.xlu0 %997
  %999 = vadd.xlane.f32.xlu0 %v955
  %v1000 = vpop.xlane.xlu0 %999
  %1001 = vadd.xlane.f32.xlu0 %v956
  %v1002 = vpop.xlane.xlu0 %1001
  %1003 = vadd.xlane.f32.xlu0 %v957
  %v1004 = vpop.xlane.xlu0 %1003
  %1005 = vadd.xlane.f32.xlu0 %v958
  %v1006 = vpop.xlane.xlu0 %1005
  %1007 = vadd.xlane.f32.xlu0 %v959
  %v1008 = vpop.xlane.xlu0 %1007
  %1009 = vadd.xlane.f32.xlu0 %v960
  %v1010 = vpop.xlane.xlu0 %1009
  %1011 = vadd.xlane.f32.xlu0 %v961
  %v1012 = vpop.xlane.xlu0 %1011
  %1013 = vadd.xlane.f32.xlu0 %v962
  %v1014 = vpop.xlane.xlu0 %1013
  %1015 = vadd.xlane.f32.xlu0 %v963
  %v1016 = vpop.xlane.xlu0 %1015
  %1017 = vadd.xlane.f32.xlu0 %v964
  %v1018 = vpop.xlane.xlu0 %1017
  %1019 = vadd.xlane.f32.xlu0 %v965
  %v1020 = vpop.xlane.xlu0 %1019
  %1021 = vadd.xlane.f32.xlu0 %v966
  %v1022 = vpop.xlane.xlu0 %1021
  %1023 = vadd.xlane.f32.xlu0 %v967
  %v1024 = vpop.xlane.xlu0 %1023
  %1025 = vadd.xlane.f32.xlu0 %v968
  %v1026 = vpop.xlane.xlu0 %1025
  %1027 = vadd.xlane.f32.xlu0 %v969
  %v1028 = vpop.xlane.xlu0 %1027
  %1029 = vadd.xlane.f32.xlu0 %v970
  %v1030 = vpop.xlane.xlu0 %1029
  %1031 = vadd.xlane.f32.xlu0 %v971
  %v1032 = vpop.xlane.xlu0 %1031
  %1033 = vadd.xlane.f32.xlu0 %v972
  %v1034 = vpop.xlane.xlu0 %1033
  %1035 = vadd.xlane.f32.xlu0 %v973
  %v1036 = vpop.xlane.xlu0 %1035
  %1037 = vadd.xlane.f32.xlu0 %v974
  %v1038 = vpop.xlane.xlu0 %1037
  %v1039 = vmul.f32 %v976, 0.010416667
  %v1040 = vmul.f32 %v978, 0.010416667
  %v1041 = vmul.f32 %v980, 0.010416667
  %v1042 = vmul.f32 %v982, 0.010416667
  %v1043 = vmul.f32 %v984, 0.010416667
  %v1044 = vmul.f32 %v986, 0.010416667
  %v1045 = vmul.f32 %v988, 0.010416667
  %v1046 = vmul.f32 %v990, 0.010416667
  %v1047 = vmul.f32 %v992, 0.010416667
  %v1048 = vmul.f32 %v994, 0.010416667
  %v1049 = vmul.f32 %v996, 0.010416667
  %v1050 = vmul.f32 %v998, 0.010416667
  %v1051 = vmul.f32 %v1000, 0.010416667
  %v1052 = vmul.f32 %v1002, 0.010416667
  %v1053 = vmul.f32 %v1004, 0.010416667
  %v1054 = vmul.f32 %v1006, 0.010416667
  %v1055 = vmul.f32 %v1008, 0.010416667
  %v1056 = vmul.f32 %v1010, 0.010416667
  %v1057 = vmul.f32 %v1012, 0.010416667
  %v1058 = vmul.f32 %v1014, 0.010416667
  %v1059 = vmul.f32 %v1016, 0.010416667
  %v1060 = vmul.f32 %v1018, 0.010416667
  %v1061 = vmul.f32 %v1020, 0.010416667
  %v1062 = vmul.f32 %v1022, 0.010416667
  %v1063 = vmul.f32 %v1024, 0.010416667
  %v1064 = vmul.f32 %v1026, 0.010416667
  %v1065 = vmul.f32 %v1028, 0.010416667
  %v1066 = vmul.f32 %v1030, 0.010416667
  %v1067 = vmul.f32 %v1032, 0.010416667
  %v1068 = vmul.f32 %v1034, 0.010416667
  %v1069 = vmul.f32 %v1036, 0.010416667
  %v1070 = vmul.f32 %v1038, 0.010416667
  %v1071 = vsub.f32 %v874, %v1039
  %v1072 = vsub.f32 %v876, %v1040
  %v1073 = vsub.f32 %v878, %v1041
  %v1074 = vsub.f32 %v880, %v1042
  %v1075 = vsub.f32 %v882, %v1043
  %v1076 = vsub.f32 %v884, %v1044
  %v1077 = vsub.f32 %v886, %v1045
  %v1078 = vsub.f32 %v888, %v1046
  %v1079 = vsub.f32 %v890, %v1047
  %v1080 = vsub.f32 %v892, %v1048
  %v1081 = vsub.f32 %v894, %v1049
  %v1082 = vsub.f32 %v896, %v1050
  %v1083 = vsub.f32 %v898, %v1051
  %v1084 = vsub.f32 %v900, %v1052
  %v1085 = vsub.f32 %v902, %v1053
  %v1086 = vsub.f32 %v904, %v1054
  %v1087 = vsub.f32 %v906, %v1055
  %v1088 = vsub.f32 %v908, %v1056
  %v1089 = vsub.f32 %v910, %v1057
  %v1090 = vsub.f32 %v912, %v1058
  %v1091 = vsub.f32 %v914, %v1059
  %v1092 = vsub.f32 %v916, %v1060
  %v1093 = vsub.f32 %v918, %v1061
  %v1094 = vsub.f32 %v920, %v1062
  %v1095 = vsub.f32 %v922, %v1063
  %v1096 = vsub.f32 %v924, %v1064
  %v1097 = vsub.f32 %v926, %v1065
  %v1098 = vsub.f32 %v928, %v1066
  %v1099 = vsub.f32 %v930, %v1067
  %v1100 = vsub.f32 %v932, %v1068
  %v1101 = vsub.f32 %v934, %v1069
  %v1102 = vsub.f32 %v936, %v1070
  %v1103 = vmul.f32 %v1071, %v942
  %v1104 = vmul.f32 %v1072, %v942
  %v1105 = vmul.f32 %v1073, %v942
  %v1106 = vmul.f32 %v1074, %v942
  %v1107 = vmul.f32 %v1075, %v942
  %v1108 = vmul.f32 %v1076, %v942
  %v1109 = vmul.f32 %v1077, %v942
  %v1110 = vmul.f32 %v1078, %v942
  %v1111 = vmul.f32 %v1079, %v942
  %v1112 = vmul.f32 %v1080, %v942
  %v1113 = vmul.f32 %v1081, %v942
  %v1114 = vmul.f32 %v1082, %v942
  %v1115 = vmul.f32 %v1083, %v942
  %v1116 = vmul.f32 %v1084, %v942
  %v1117 = vmul.f32 %v1085, %v942
  %v1118 = vmul.f32 %v1086, %v942
  %v1119 = vmul.f32 %v1087, %v942
  %v1120 = vmul.f32 %v1088, %v942
  %v1121 = vmul.f32 %v1089, %v942
  %v1122 = vmul.f32 %v1090, %v942
  %v1123 = vmul.f32 %v1091, %v942
  %v1124 = vmul.f32 %v1092, %v942
  %v1125 = vmul.f32 %v1093, %v942
  %v1126 = vmul.f32 %v1094, %v942
  %v1127 = vmul.f32 %v1095, %v942
  %v1128 = vmul.f32 %v1096, %v942
  %v1129 = vmul.f32 %v1097, %v942
  %v1130 = vmul.f32 %v1098, %v942
  %v1131 = vmul.f32 %v1099, %v942
  %v1132 = vmul.f32 %v1100, %v942
  %v1133 = vmul.f32 %v1101, %v942
  %v1134 = vmul.f32 %v1102, %v942
  %v1135 = vmul.f32 %v1103, %v1103
  %v1136 = vmul.f32 %v1104, %v1104
  %v1137 = vmul.f32 %v1105, %v1105
  %v1138 = vmul.f32 %v1106, %v1106
  %v1139 = vmul.f32 %v1107, %v1107
  %v1140 = vmul.f32 %v1108, %v1108
  %v1141 = vmul.f32 %v1109, %v1109
  %v1142 = vmul.f32 %v1110, %v1110
  %v1143 = vmul.f32 %v1111, %v1111
  %v1144 = vmul.f32 %v1112, %v1112
  %v1145 = vmul.f32 %v1113, %v1113
  %v1146 = vmul.f32 %v1114, %v1114
  %v1147 = vmul.f32 %v1115, %v1115
  %v1148 = vmul.f32 %v1116, %v1116
  %v1149 = vmul.f32 %v1117, %v1117
  %v1150 = vmul.f32 %v1118, %v1118
  %v1151 = vmul.f32 %v1119, %v1119
  %v1152 = vmul.f32 %v1120, %v1120
  %v1153 = vmul.f32 %v1121, %v1121
  %v1154 = vmul.f32 %v1122, %v1122
  %v1155 = vmul.f32 %v1123, %v1123
  %v1156 = vmul.f32 %v1124, %v1124
  %v1157 = vmul.f32 %v1125, %v1125
  %v1158 = vmul.f32 %v1126, %v1126
  %v1159 = vmul.f32 %v1127, %v1127
  %v1160 = vmul.f32 %v1128, %v1128
  %v1161 = vmul.f32 %v1129, %v1129
  %v1162 = vmul.f32 %v1130, %v1130
  %v1163 = vmul.f32 %v1131, %v1131
  %v1164 = vmul.f32 %v1132, %v1132
  %v1165 = vmul.f32 %v1133, %v1133
  %v1166 = vmul.f32 %v1134, %v1134
  %1167 = vadd.xlane.f32.xlu0 %v1135
  %v1168 = vpop.xlane.xlu0 %1167
  %1169 = vadd.xlane.f32.xlu0 %v1136
  %v1170 = vpop.xlane.xlu0 %1169
  %1171 = vadd.xlane.f32.xlu0 %v1137
  %v1172 = vpop.xlane.xlu0 %1171
  %1173 = vadd.xlane.f32.xlu0 %v1138
  %v1174 = vpop.xlane.xlu0 %1173
  %1175 = vadd.xlane.f32.xlu0 %v1139
  %v1176 = vpop.xlane.xlu0 %1175
  %1177 = vadd.xlane.f32.xlu0 %v1140
  %v1178 = vpop.xlane.xlu0 %1177
  %1179 = vadd.xlane.f32.xlu0 %v1141
  %v1180 = vpop.xlane.xlu0 %1179
  %1181 = vadd.xlane.f32.xlu0 %v1142
  %v1182 = vpop.xlane.xlu0 %1181
  %1183 = vadd.xlane.f32.xlu0 %v1143
  %v1184 = vpop.xlane.xlu0 %1183
  %1185 = vadd.xlane.f32.xlu0 %v1144
  %v1186 = vpop.xlane.xlu0 %1185
  %1187 = vadd.xlane.f32.xlu0 %v1145
  %v1188 = vpop.xlane.xlu0 %1187
  %1189 = vadd.xlane.f32.xlu0 %v1146
  %v1190 = vpop.xlane.xlu0 %1189
  %1191 = vadd.xlane.f32.xlu0 %v1147
  %v1192 = vpop.xlane.xlu0 %1191
  %1193 = vadd.xlane.f32.xlu0 %v1148
  %v1194 = vpop.xlane.xlu0 %1193
  %1195 = vadd.xlane.f32.xlu0 %v1149
  %v1196 = vpop.xlane.xlu0 %1195
  %1197 = vadd.xlane.f32.xlu0 %v1150
  %v1198 = vpop.xlane.xlu0 %1197
  %1199 = vadd.xlane.f32.xlu0 %v1151
  %v1200 = vpop.xlane.xlu0 %1199
  %1201 = vadd.xlane.f32.xlu0 %v1152
  %v1202 = vpop.xlane.xlu0 %1201
  %1203 = vadd.xlane.f32.xlu0 %v1153
  %v1204 = vpop.xlane.xlu0 %1203
  %1205 = vadd.xlane.f32.xlu0 %v1154
  %v1206 = vpop.xlane.xlu0 %1205
  %1207 = vadd.xlane.f32.xlu0 %v1155
  %v1208 = vpop.xlane.xlu0 %1207
  %1209 = vadd.xlane.f32.xlu0 %v1156
  %v1210 = vpop.xlane.xlu0 %1209
  %1211 = vadd.xlane.f32.xlu0 %v1157
  %v1212 = vpop.xlane.xlu0 %1211
  %1213 = vadd.xlane.f32.xlu0 %v1158
  %v1214 = vpop.xlane.xlu0 %1213
  %1215 = vadd.xlane.f32.xlu0 %v1159
  %v1216 = vpop.xlane.xlu0 %1215
  %1217 = vadd.xlane.f32.xlu0 %v1160
  %v1218 = vpop.xlane.xlu0 %1217
  %1219 = vadd.xlane.f32.xlu0 %v1161
  %v1220 = vpop.xlane.xlu0 %1219
  %1221 = vadd.xlane.f32.xlu0 %v1162
  %v1222 = vpop.xlane.xlu0 %1221
  %1223 = vadd.xlane.f32.xlu0 %v1163
  %v1224 = vpop.xlane.xlu0 %1223
  %1225 = vadd.xlane.f32.xlu0 %v1164
  %v1226 = vpop.xlane.xlu0 %1225
  %1227 = vadd.xlane.f32.xlu0 %v1165
  %v1228 = vpop.xlane.xlu0 %1227
  %1229 = vadd.xlane.f32.xlu0 %v1166
  %v1230 = vpop.xlane.xlu0 %1229
  %v1231 = vmul.f32 %v1168, 0.010416667
  %v1232 = vmul.f32 %v1170, 0.010416667
  %v1233 = vmul.f32 %v1172, 0.010416667
  %v1234 = vmul.f32 %v1174, 0.010416667
  %v1235 = vmul.f32 %v1176, 0.010416667
  %v1236 = vmul.f32 %v1178, 0.010416667
  %v1237 = vmul.f32 %v1180, 0.010416667
  %v1238 = vmul.f32 %v1182, 0.010416667
  %v1239 = vmul.f32 %v1184, 0.010416667
  %v1240 = vmul.f32 %v1186, 0.010416667
  %v1241 = vmul.f32 %v1188, 0.010416667
  %v1242 = vmul.f32 %v1190, 0.010416667
  %v1243 = vmul.f32 %v1192, 0.010416667
  %v1244 = vmul.f32 %v1194, 0.010416667
  %v1245 = vmul.f32 %v1196, 0.010416667
  %v1246 = vmul.f32 %v1198, 0.010416667
  %v1247 = vmul.f32 %v1200, 0.010416667
  %v1248 = vmul.f32 %v1202, 0.010416667
  %v1249 = vmul.f32 %v1204, 0.010416667
  %v1250 = vmul.f32 %v1206, 0.010416667
  %v1251 = vmul.f32 %v1208, 0.010416667
  %v1252 = vmul.f32 %v1210, 0.010416667
  %v1253 = vmul.f32 %v1212, 0.010416667
  %v1254 = vmul.f32 %v1214, 0.010416667
  %v1255 = vmul.f32 %v1216, 0.010416667
  %v1256 = vmul.f32 %v1218, 0.010416667
  %v1257 = vmul.f32 %v1220, 0.010416667
  %v1258 = vmul.f32 %v1222, 0.010416667
  %v1259 = vmul.f32 %v1224, 0.010416667
  %v1260 = vmul.f32 %v1226, 0.010416667
  %v1261 = vmul.f32 %v1228, 0.010416667
  %v1262 = vmul.f32 %v1230, 0.010416667
  %v1263 = vadd.f32 %v1231, 1e-06
  %v1264 = vadd.f32 %v1232, 1e-06
  %v1265 = vadd.f32 %v1233, 1e-06
  %v1266 = vadd.f32 %v1234, 1e-06
  %v1267 = vadd.f32 %v1235, 1e-06
  %v1268 = vadd.f32 %v1236, 1e-06
  %v1269 = vadd.f32 %v1237, 1e-06
  %v1270 = vadd.f32 %v1238, 1e-06
  %v1271 = vadd.f32 %v1239, 1e-06
  %v1272 = vadd.f32 %v1240, 1e-06
  %v1273 = vadd.f32 %v1241, 1e-06
  %v1274 = vadd.f32 %v1242, 1e-06
  %v1275 = vadd.f32 %v1243, 1e-06
  %v1276 = vadd.f32 %v1244, 1e-06
  %v1277 = vadd.f32 %v1245, 1e-06
  %v1278 = vadd.f32 %v1246, 1e-06
  %v1279 = vadd.f32 %v1247, 1e-06
  %v1280 = vadd.f32 %v1248, 1e-06
  %v1281 = vadd.f32 %v1249, 1e-06
  %v1282 = vadd.f32 %v1250, 1e-06
  %v1283 = vadd.f32 %v1251, 1e-06
  %v1284 = vadd.f32 %v1252, 1e-06
  %v1285 = vadd.f32 %v1253, 1e-06
  %v1286 = vadd.f32 %v1254, 1e-06
  %v1287 = vadd.f32 %v1255, 1e-06
  %v1288 = vadd.f32 %v1256, 1e-06
  %v1289 = vadd.f32 %v1257, 1e-06
  %v1290 = vadd.f32 %v1258, 1e-06
  %v1291 = vadd.f32 %v1259, 1e-06
  %v1292 = vadd.f32 %v1260, 1e-06
  %v1293 = vadd.f32 %v1261, 1e-06
  %v1294 = vadd.f32 %v1262, 1e-06
  %v1295 = vrsqrt.pop %v1263
  %v1296 = vrsqrt.pop %v1264
  %v1297 = vrsqrt.pop %v1265
  %v1298 = vrsqrt.pop %v1266
  %v1299 = vrsqrt.pop %v1267
  %v1300 = vrsqrt.pop %v1268
  %v1301 = vrsqrt.pop %v1269
  %v1302 = vrsqrt.pop %v1270
  %v1303 = vrsqrt.pop %v1271
  %v1304 = vrsqrt.pop %v1272
  %v1305 = vrsqrt.pop %v1273
  %v1306 = vrsqrt.pop %v1274
  %v1307 = vrsqrt.pop %v1275
  %v1308 = vrsqrt.pop %v1276
  %v1309 = vrsqrt.pop %v1277
  %v1310 = vrsqrt.pop %v1278
  %v1311 = vrsqrt.pop %v1279
  %v1312 = vrsqrt.pop %v1280
  %v1313 = vrsqrt.pop %v1281
  %v1314 = vrsqrt.pop %v1282
  %v1315 = vrsqrt.pop %v1283
  %v1316 = vrsqrt.pop %v1284
  %v1317 = vrsqrt.pop %v1285
  %v1318 = vrsqrt.pop %v1286
  %v1319 = vrsqrt.pop %v1287
  %v1320 = vrsqrt.pop %v1288
  %v1321 = vrsqrt.pop %v1289
  %v1322 = vrsqrt.pop %v1290
  %v1323 = vrsqrt.pop %v1291
  %v1324 = vrsqrt.pop %v1292
  %v1325 = vrsqrt.pop %v1293
  %v1326 = vrsqrt.pop %v1294
  %v1327 = vmul.f32 %v1103, %v1295
  %v1328 = vmul.f32 %v1104, %v1296
  %v1329 = vmul.f32 %v1105, %v1297
  %v1330 = vmul.f32 %v1106, %v1298
  %v1331 = vmul.f32 %v1107, %v1299
  %v1332 = vmul.f32 %v1108, %v1300
  %v1333 = vmul.f32 %v1109, %v1301
  %v1334 = vmul.f32 %v1110, %v1302
  %v1335 = vmul.f32 %v1111, %v1303
  %v1336 = vmul.f32 %v1112, %v1304
  %v1337 = vmul.f32 %v1113, %v1305
  %v1338 = vmul.f32 %v1114, %v1306
  %v1339 = vmul.f32 %v1115, %v1307
  %v1340 = vmul.f32 %v1116, %v1308
  %v1341 = vmul.f32 %v1117, %v1309
  %v1342 = vmul.f32 %v1118, %v1310
  %v1343 = vmul.f32 %v1119, %v1311
  %v1344 = vmul.f32 %v1120, %v1312
  %v1345 = vmul.f32 %v1121, %v1313
  %v1346 = vmul.f32 %v1122, %v1314
  %v1347 = vmul.f32 %v1123, %v1315
  %v1348 = vmul.f32 %v1124, %v1316
  %v1349 = vmul.f32 %v1125, %v1317
  %v1350 = vmul.f32 %v1126, %v1318
  %v1351 = vmul.f32 %v1127, %v1319
  %v1352 = vmul.f32 %v1128, %v1320
  %v1353 = vmul.f32 %v1129, %v1321
  %v1354 = vmul.f32 %v1130, %v1322
  %v1355 = vmul.f32 %v1131, %v1323
  %v1356 = vmul.f32 %v1132, %v1324
  %v1357 = vmul.f32 %v1133, %v1325
  %v1358 = vmul.f32 %v1134, %v1326
  %v1359 = vld [vmem:[%s6] sm:$0x1]
  %v1361 = vlaneseq
  %v1362 = vshrl.u32 %v1361, 7
  %v1363 = vsub.s32 0, %v1362
  %v1364 = vrot.slane %v1359, %v1363
  %v1366 = vmul.f32 %v1327, %v1364
  %v1367 = vmul.f32 %v1328, %v1364
  %v1368 = vmul.f32 %v1329, %v1364
  %v1369 = vmul.f32 %v1330, %v1364
  %v1370 = vmul.f32 %v1331, %v1364
  %v1371 = vmul.f32 %v1332, %v1364
  %v1372 = vmul.f32 %v1333, %v1364
  %v1373 = vmul.f32 %v1334, %v1364
  %v1374 = vmul.f32 %v1335, %v1364
  %v1375 = vmul.f32 %v1336, %v1364
  %v1376 = vmul.f32 %v1337, %v1364
  %v1377 = vmul.f32 %v1338, %v1364
  %v1378 = vmul.f32 %v1339, %v1364
  %v1379 = vmul.f32 %v1340, %v1364
  %v1380 = vmul.f32 %v1341, %v1364
  %v1381 = vmul.f32 %v1342, %v1364
  %v1382 = vmul.f32 %v1343, %v1364
  %v1383 = vmul.f32 %v1344, %v1364
  %v1384 = vmul.f32 %v1345, %v1364
  %v1385 = vmul.f32 %v1346, %v1364
  %v1386 = vmul.f32 %v1347, %v1364
  %v1387 = vmul.f32 %v1348, %v1364
  %v1388 = vmul.f32 %v1349, %v1364
  %v1389 = vmul.f32 %v1350, %v1364
  %v1390 = vmul.f32 %v1351, %v1364
  %v1391 = vmul.f32 %v1352, %v1364
  %v1392 = vmul.f32 %v1353, %v1364
  %v1393 = vmul.f32 %v1354, %v1364
  %v1394 = vmul.f32 %v1355, %v1364
  %v1395 = vmul.f32 %v1356, %v1364
  %v1396 = vmul.f32 %v1357, %v1364
  %v1397 = vmul.f32 %v1358, %v1364
  %v1398 = vld [vmem:[%s7] sm:$0x1]
  %v1400 = vlaneseq
  %v1401 = vshrl.u32 %v1400, 7
  %v1402 = vsub.s32 0, %v1401
  %v1403 = vrot.slane %v1398, %v1402
  %v1405 = vadd.f32 %v1366, %v1403
  %v1406 = vadd.f32 %v1367, %v1403
  %v1407 = vadd.f32 %v1368, %v1403
  %v1408 = vadd.f32 %v1369, %v1403
  %v1409 = vadd.f32 %v1370, %v1403
  %v1410 = vadd.f32 %v1371, %v1403
  %v1411 = vadd.f32 %v1372, %v1403
  %v1412 = vadd.f32 %v1373, %v1403
  %v1413 = vadd.f32 %v1374, %v1403
  %v1414 = vadd.f32 %v1375, %v1403
  %v1415 = vadd.f32 %v1376, %v1403
  %v1416 = vadd.f32 %v1377, %v1403
  %v1417 = vadd.f32 %v1378, %v1403
  %v1418 = vadd.f32 %v1379, %v1403
  %v1419 = vadd.f32 %v1380, %v1403
  %v1420 = vadd.f32 %v1381, %v1403
  %v1421 = vadd.f32 %v1382, %v1403
  %v1422 = vadd.f32 %v1383, %v1403
  %v1423 = vadd.f32 %v1384, %v1403
  %v1424 = vadd.f32 %v1385, %v1403
  %v1425 = vadd.f32 %v1386, %v1403
  %v1426 = vadd.f32 %v1387, %v1403
  %v1427 = vadd.f32 %v1388, %v1403
  %v1428 = vadd.f32 %v1389, %v1403
  %v1429 = vadd.f32 %v1390, %v1403
  %v1430 = vadd.f32 %v1391, %v1403
  %v1431 = vadd.f32 %v1392, %v1403
  %v1432 = vadd.f32 %v1393, %v1403
  %v1433 = vadd.f32 %v1394, %v1403
  %v1434 = vadd.f32 %v1395, %v1403
  %v1435 = vadd.f32 %v1396, %v1403
  %v1436 = vadd.f32 %v1397, %v1403
  %v1437 = vxor.u32 %v1405, 2147483648
  %v1438 = vxor.u32 %v1406, 2147483648
  %v1439 = vxor.u32 %v1407, 2147483648
  %v1440 = vxor.u32 %v1408, 2147483648
  %v1441 = vxor.u32 %v1409, 2147483648
  %v1442 = vxor.u32 %v1410, 2147483648
  %v1443 = vxor.u32 %v1411, 2147483648
  %v1444 = vxor.u32 %v1412, 2147483648
  %v1445 = vxor.u32 %v1413, 2147483648
  %v1446 = vxor.u32 %v1414, 2147483648
  %v1447 = vxor.u32 %v1415, 2147483648
  %v1448 = vxor.u32 %v1416, 2147483648
  %v1449 = vxor.u32 %v1417, 2147483648
  %v1450 = vxor.u32 %v1418, 2147483648
  %v1451 = vxor.u32 %v1419, 2147483648
  %v1452 = vxor.u32 %v1420, 2147483648
  %v1453 = vxor.u32 %v1421, 2147483648
  %v1454 = vxor.u32 %v1422, 2147483648
  %v1455 = vxor.u32 %v1423, 2147483648
  %v1456 = vxor.u32 %v1424, 2147483648
  %v1457 = vxor.u32 %v1425, 2147483648
  %v1458 = vxor.u32 %v1426, 2147483648
  %v1459 = vxor.u32 %v1427, 2147483648
  %v1460 = vxor.u32 %v1428, 2147483648
  %v1461 = vxor.u32 %v1429, 2147483648
  %v1462 = vxor.u32 %v1430, 2147483648
  %v1463 = vxor.u32 %v1431, 2147483648
  %v1464 = vxor.u32 %v1432, 2147483648
  %v1465 = vxor.u32 %v1433, 2147483648
  %v1466 = vxor.u32 %v1434, 2147483648
  %v1467 = vxor.u32 %v1435, 2147483648
  %v1468 = vxor.u32 %v1436, 2147483648
  %v1469 = vmul.f32 %v1437, 1.442695
  %v1470 = vpow.pop %v1469
  %v1471 = vmul.f32 %v1438, 1.442695
  %v1472 = vpow.pop %v1471
  %v1473 = vmul.f32 %v1439, 1.442695
  %v1474 = vpow.pop %v1473
  %v1475 = vmul.f32 %v1440, 1.442695
  %v1476 = vpow.pop %v1475
  %v1477 = vmul.f32 %v1441, 1.442695
  %v1478 = vpow.pop %v1477
  %v1479 = vmul.f32 %v1442, 1.442695
  %v1480 = vpow.pop %v1479
  %v1481 = vmul.f32 %v1443, 1.442695
  %v1482 = vpow.pop %v1481
  %v1483 = vmul.f32 %v1444, 1.442695
  %v1484 = vpow.pop %v1483
  %v1485 = vmul.f32 %v1445, 1.442695
  %v1486 = vpow.pop %v1485
  %v1487 = vmul.f32 %v1446, 1.442695
  %v1488 = vpow.pop %v1487
  %v1489 = vmul.f32 %v1447, 1.442695
  %v1490 = vpow.pop %v1489
  %v1491 = vmul.f32 %v1448, 1.442695
  %v1492 = vpow.pop %v1491
  %v1493 = vmul.f32 %v1449, 1.442695
  %v1494 = vpow.pop %v1493
  %v1495 = vmul.f32 %v1450, 1.442695
  %v1496 = vpow.pop %v1495
  %v1497 = vmul.f32 %v1451, 1.442695
  %v1498 = vpow.pop %v1497
  %v1499 = vmul.f32 %v1452, 1.442695
  %v1500 = vpow.pop %v1499
  %v1501 = vmul.f32 %v1453, 1.442695
  %v1502 = vpow.pop %v1501
  %v1503 = vmul.f32 %v1454, 1.442695
  %v1504 = vpow.pop %v1503
  %v1505 = vmul.f32 %v1455, 1.442695
  %v1506 = vpow.pop %v1505
  %v1507 = vmul.f32 %v1456, 1.442695
  %v1508 = vpow.pop %v1507
  %v1509 = vmul.f32 %v1457, 1.442695
  %v1510 = vpow.pop %v1509
  %v1511 = vmul.f32 %v1458, 1.442695
  %v1512 = vpow.pop %v1511
  %v1513 = vmul.f32 %v1459, 1.442695
  %v1514 = vpow.pop %v1513
  %v1515 = vmul.f32 %v1460, 1.442695
  %v1516 = vpow.pop %v1515
  %v1517 = vmul.f32 %v1461, 1.442695
  %v1518 = vpow.pop %v1517
  %v1519 = vmul.f32 %v1462, 1.442695
  %v1520 = vpow.pop %v1519
  %v1521 = vmul.f32 %v1463, 1.442695
  %v1522 = vpow.pop %v1521
  %v1523 = vmul.f32 %v1464, 1.442695
  %v1524 = vpow.pop %v1523
  %v1525 = vmul.f32 %v1465, 1.442695
  %v1526 = vpow.pop %v1525
  %v1527 = vmul.f32 %v1466, 1.442695
  %v1528 = vpow.pop %v1527
  %v1529 = vmul.f32 %v1467, 1.442695
  %v1530 = vpow.pop %v1529
  %v1531 = vmul.f32 %v1468, 1.442695
  %v1532 = vpow.pop %v1531
  %v1533 = vadd.f32 %v1470, 1.0
  %v1534 = vadd.f32 %v1472, 1.0
  %v1535 = vadd.f32 %v1474, 1.0
  %v1536 = vadd.f32 %v1476, 1.0
  %v1537 = vadd.f32 %v1478, 1.0
  %v1538 = vadd.f32 %v1480, 1.0
  %v1539 = vadd.f32 %v1482, 1.0
  %v1540 = vadd.f32 %v1484, 1.0
  %v1541 = vadd.f32 %v1486, 1.0
  %v1542 = vadd.f32 %v1488, 1.0
  %v1543 = vadd.f32 %v1490, 1.0
  %v1544 = vadd.f32 %v1492, 1.0
  %v1545 = vadd.f32 %v1494, 1.0
  %v1546 = vadd.f32 %v1496, 1.0
  %v1547 = vadd.f32 %v1498, 1.0
  %v1548 = vadd.f32 %v1500, 1.0
  %v1549 = vadd.f32 %v1502, 1.0
  %v1550 = vadd.f32 %v1504, 1.0
  %v1551 = vadd.f32 %v1506, 1.0
  %v1552 = vadd.f32 %v1508, 1.0
  %v1553 = vadd.f32 %v1510, 1.0
  %v1554 = vadd.f32 %v1512, 1.0
  %v1555 = vadd.f32 %v1514, 1.0
  %v1556 = vadd.f32 %v1516, 1.0
  %v1557 = vadd.f32 %v1518, 1.0
  %v1558 = vadd.f32 %v1520, 1.0
  %v1559 = vadd.f32 %v1522, 1.0
  %v1560 = vadd.f32 %v1524, 1.0
  %v1561 = vadd.f32 %v1526, 1.0
  %v1562 = vadd.f32 %v1528, 1.0
  %v1563 = vadd.f32 %v1530, 1.0
  %v1564 = vadd.f32 %v1532, 1.0
  %v1565 = vrcp.pop %v1533
  %v1566 = vmul.f32 1.0, %v1565
  %v1567 = vrcp.pop %v1534
  %v1568 = vmul.f32 1.0, %v1567
  %v1569 = vrcp.pop %v1535
  %v1570 = vmul.f32 1.0, %v1569
  %v1571 = vrcp.pop %v1536
  %v1572 = vmul.f32 1.0, %v1571
  %v1573 = vrcp.pop %v1537
  %v1574 = vmul.f32 1.0, %v1573
  %v1575 = vrcp.pop %v1538
  %v1576 = vmul.f32 1.0, %v1575
  %v1577 = vrcp.pop %v1539
  %v1578 = vmul.f32 1.0, %v1577
  %v1579 = vrcp.pop %v1540
  %v1580 = vmul.f32 1.0, %v1579
  %v1581 = vrcp.pop %v1541
  %v1582 = vmul.f32 1.0, %v1581
  %v1583 = vrcp.pop %v1542
  %v1584 = vmul.f32 1.0, %v1583
  %v1585 = vrcp.pop %v1543
  %v1586 = vmul.f32 1.0, %v1585
  %v1587 = vrcp.pop %v1544
  %v1588 = vmul.f32 1.0, %v1587
  %v1589 = vrcp.pop %v1545
  %v1590 = vmul.f32 1.0, %v1589
  %v1591 = vrcp.pop %v1546
  %v1592 = vmul.f32 1.0, %v1591
  %v1593 = vrcp.pop %v1547
  %v1594 = vmul.f32 1.0, %v1593
  %v1595 = vrcp.pop %v1548
  %v1596 = vmul.f32 1.0, %v1595
  %v1597 = vrcp.pop %v1549
  %v1598 = vmul.f32 1.0, %v1597
  %v1599 = vrcp.pop %v1550
  %v1600 = vmul.f32 1.0, %v1599
  %v1601 = vrcp.pop %v1551
  %v1602 = vmul.f32 1.0, %v1601
  %v1603 = vrcp.pop %v1552
  %v1604 = vmul.f32 1.0, %v1603
  %v1605 = vrcp.pop %v1553
  %v1606 = vmul.f32 1.0, %v1605
  %v1607 = vrcp.pop %v1554
  %v1608 = vmul.f32 1.0, %v1607
  %v1609 = vrcp.pop %v1555
  %v1610 = vmul.f32 1.0, %v1609
  %v1611 = vrcp.pop %v1556
  %v1612 = vmul.f32 1.0, %v1611
  %v1613 = vrcp.pop %v1557
  %v1614 = vmul.f32 1.0, %v1613
  %v1615 = vrcp.pop %v1558
  %v1616 = vmul.f32 1.0, %v1615
  %v1617 = vrcp.pop %v1559
  %v1618 = vmul.f32 1.0, %v1617
  %v1619 = vrcp.pop %v1560
  %v1620 = vmul.f32 1.0, %v1619
  %v1621 = vrcp.pop %v1561
  %v1622 = vmul.f32 1.0, %v1621
  %v1623 = vrcp.pop %v1562
  %v1624 = vmul.f32 1.0, %v1623
  %v1625 = vrcp.pop %v1563
  %v1626 = vmul.f32 1.0, %v1625
  %v1627 = vrcp.pop %v1564
  %v1628 = vmul.f32 1.0, %v1627
  %1629 = vadd.xlane.f32.xlu0 %v875
  %v1630 = vpop.xlane.xlu0 %1629
  %1631 = vadd.xlane.f32.xlu0 %v877
  %v1632 = vpop.xlane.xlu0 %1631
  %1633 = vadd.xlane.f32.xlu0 %v879
  %v1634 = vpop.xlane.xlu0 %1633
  %1635 = vadd.xlane.f32.xlu0 %v881
  %v1636 = vpop.xlane.xlu0 %1635
  %1637 = vadd.xlane.f32.xlu0 %v883
  %v1638 = vpop.xlane.xlu0 %1637
  %1639 = vadd.xlane.f32.xlu0 %v885
  %v1640 = vpop.xlane.xlu0 %1639
  %1641 = vadd.xlane.f32.xlu0 %v887
  %v1642 = vpop.xlane.xlu0 %1641
  %1643 = vadd.xlane.f32.xlu0 %v889
  %v1644 = vpop.xlane.xlu0 %1643
  %1645 = vadd.xlane.f32.xlu0 %v891
  %v1646 = vpop.xlane.xlu0 %1645
  %1647 = vadd.xlane.f32.xlu0 %v893
  %v1648 = vpop.xlane.xlu0 %1647
  %1649 = vadd.xlane.f32.xlu0 %v895
  %v1650 = vpop.xlane.xlu0 %1649
  %1651 = vadd.xlane.f32.xlu0 %v897
  %v1652 = vpop.xlane.xlu0 %1651
  %1653 = vadd.xlane.f32.xlu0 %v899
  %v1654 = vpop.xlane.xlu0 %1653
  %1655 = vadd.xlane.f32.xlu0 %v901
  %v1656 = vpop.xlane.xlu0 %1655
  %1657 = vadd.xlane.f32.xlu0 %v903
  %v1658 = vpop.xlane.xlu0 %1657
  %1659 = vadd.xlane.f32.xlu0 %v905
  %v1660 = vpop.xlane.xlu0 %1659
  %1661 = vadd.xlane.f32.xlu0 %v907
  %v1662 = vpop.xlane.xlu0 %1661
  %1663 = vadd.xlane.f32.xlu0 %v909
  %v1664 = vpop.xlane.xlu0 %1663
  %1665 = vadd.xlane.f32.xlu0 %v911
  %v1666 = vpop.xlane.xlu0 %1665
  %1667 = vadd.xlane.f32.xlu0 %v913
  %v1668 = vpop.xlane.xlu0 %1667
  %1669 = vadd.xlane.f32.xlu0 %v915
  %v1670 = vpop.xlane.xlu0 %1669
  %1671 = vadd.xlane.f32.xlu0 %v917
  %v1672 = vpop.xlane.xlu0 %1671
  %1673 = vadd.xlane.f32.xlu0 %v919
  %v1674 = vpop.xlane.xlu0 %1673
  %1675 = vadd.xlane.f32.xlu0 %v921
  %v1676 = vpop.xlane.xlu0 %1675
  %1677 = vadd.xlane.f32.xlu0 %v923
  %v1678 = vpop.xlane.xlu0 %1677
  %1679 = vadd.xlane.f32.xlu0 %v925
  %v1680 = vpop.xlane.xlu0 %1679
  %1681 = vadd.xlane.f32.xlu0 %v927
  %v1682 = vpop.xlane.xlu0 %1681
  %1683 = vadd.xlane.f32.xlu0 %v929
  %v1684 = vpop.xlane.xlu0 %1683
  %1685 = vadd.xlane.f32.xlu0 %v931
  %v1686 = vpop.xlane.xlu0 %1685
  %1687 = vadd.xlane.f32.xlu0 %v933
  %v1688 = vpop.xlane.xlu0 %1687
  %1689 = vadd.xlane.f32.xlu0 %v935
  %v1690 = vpop.xlane.xlu0 %1689
  %1691 = vadd.xlane.f32.xlu0 %v937
  %v1692 = vpop.xlane.xlu0 %1691
  %v1693 = vrcp.pop 128.0
  %v1694 = vmul.f32 %v1630, %v1693
  %v1695 = vmul.f32 %v1632, %v1693
  %v1696 = vmul.f32 %v1634, %v1693
  %v1697 = vmul.f32 %v1636, %v1693
  %v1698 = vmul.f32 %v1638, %v1693
  %v1699 = vmul.f32 %v1640, %v1693
  %v1700 = vmul.f32 %v1642, %v1693
  %v1701 = vmul.f32 %v1644, %v1693
  %v1702 = vmul.f32 %v1646, %v1693
  %v1703 = vmul.f32 %v1648, %v1693
  %v1704 = vmul.f32 %v1650, %v1693
  %v1705 = vmul.f32 %v1652, %v1693
  %v1706 = vmul.f32 %v1654, %v1693
  %v1707 = vmul.f32 %v1656, %v1693
  %v1708 = vmul.f32 %v1658, %v1693
  %v1709 = vmul.f32 %v1660, %v1693
  %v1710 = vmul.f32 %v1662, %v1693
  %v1711 = vmul.f32 %v1664, %v1693
  %v1712 = vmul.f32 %v1666, %v1693
  %v1713 = vmul.f32 %v1668, %v1693
  %v1714 = vmul.f32 %v1670, %v1693
  %v1715 = vmul.f32 %v1672, %v1693
  %v1716 = vmul.f32 %v1674, %v1693
  %v1717 = vmul.f32 %v1676, %v1693
  %v1718 = vmul.f32 %v1678, %v1693
  %v1719 = vmul.f32 %v1680, %v1693
  %v1720 = vmul.f32 %v1682, %v1693
  %v1721 = vmul.f32 %v1684, %v1693
  %v1722 = vmul.f32 %v1686, %v1693
  %v1723 = vmul.f32 %v1688, %v1693
  %v1724 = vmul.f32 %v1690, %v1693
  %v1725 = vmul.f32 %v1692, %v1693
  %v1726 = vsub.f32 %v875, %v1694
  %v1727 = vsub.f32 %v877, %v1695
  %v1728 = vsub.f32 %v879, %v1696
  %v1729 = vsub.f32 %v881, %v1697
  %v1730 = vsub.f32 %v883, %v1698
  %v1731 = vsub.f32 %v885, %v1699
  %v1732 = vsub.f32 %v887, %v1700
  %v1733 = vsub.f32 %v889, %v1701
  %v1734 = vsub.f32 %v891, %v1702
  %v1735 = vsub.f32 %v893, %v1703
  %v1736 = vsub.f32 %v895, %v1704
  %v1737 = vsub.f32 %v897, %v1705
  %v1738 = vsub.f32 %v899, %v1706
  %v1739 = vsub.f32 %v901, %v1707
  %v1740 = vsub.f32 %v903, %v1708
  %v1741 = vsub.f32 %v905, %v1709
  %v1742 = vsub.f32 %v907, %v1710
  %v1743 = vsub.f32 %v909, %v1711
  %v1744 = vsub.f32 %v911, %v1712
  %v1745 = vsub.f32 %v913, %v1713
  %v1746 = vsub.f32 %v915, %v1714
  %v1747 = vsub.f32 %v917, %v1715
  %v1748 = vsub.f32 %v919, %v1716
  %v1749 = vsub.f32 %v921, %v1717
  %v1750 = vsub.f32 %v923, %v1718
  %v1751 = vsub.f32 %v925, %v1719
  %v1752 = vsub.f32 %v927, %v1720
  %v1753 = vsub.f32 %v929, %v1721
  %v1754 = vsub.f32 %v931, %v1722
  %v1755 = vsub.f32 %v933, %v1723
  %v1756 = vsub.f32 %v935, %v1724
  %v1757 = vsub.f32 %v937, %v1725
  %v1758 = vmul.f32 %v1726, %v1726
  %v1759 = vmul.f32 %v1727, %v1727
  %v1760 = vmul.f32 %v1728, %v1728
  %v1761 = vmul.f32 %v1729, %v1729
  %v1762 = vmul.f32 %v1730, %v1730
  %v1763 = vmul.f32 %v1731, %v1731
  %v1764 = vmul.f32 %v1732, %v1732
  %v1765 = vmul.f32 %v1733, %v1733
  %v1766 = vmul.f32 %v1734, %v1734
  %v1767 = vmul.f32 %v1735, %v1735
  %v1768 = vmul.f32 %v1736, %v1736
  %v1769 = vmul.f32 %v1737, %v1737
  %v1770 = vmul.f32 %v1738, %v1738
  %v1771 = vmul.f32 %v1739, %v1739
  %v1772 = vmul.f32 %v1740, %v1740
  %v1773 = vmul.f32 %v1741, %v1741
  %v1774 = vmul.f32 %v1742, %v1742
  %v1775 = vmul.f32 %v1743, %v1743
  %v1776 = vmul.f32 %v1744, %v1744
  %v1777 = vmul.f32 %v1745, %v1745
  %v1778 = vmul.f32 %v1746, %v1746
  %v1779 = vmul.f32 %v1747, %v1747
  %v1780 = vmul.f32 %v1748, %v1748
  %v1781 = vmul.f32 %v1749, %v1749
  %v1782 = vmul.f32 %v1750, %v1750
  %v1783 = vmul.f32 %v1751, %v1751
  %v1784 = vmul.f32 %v1752, %v1752
  %v1785 = vmul.f32 %v1753, %v1753
  %v1786 = vmul.f32 %v1754, %v1754
  %v1787 = vmul.f32 %v1755, %v1755
  %v1788 = vmul.f32 %v1756, %v1756
  %v1789 = vmul.f32 %v1757, %v1757
  %1790 = vadd.xlane.f32.xlu0 %v1758
  %v1791 = vpop.xlane.xlu0 %1790
  %1792 = vadd.xlane.f32.xlu0 %v1759
  %v1793 = vpop.xlane.xlu0 %1792
  %1794 = vadd.xlane.f32.xlu0 %v1760
  %v1795 = vpop.xlane.xlu0 %1794
  %1796 = vadd.xlane.f32.xlu0 %v1761
  %v1797 = vpop.xlane.xlu0 %1796
  %1798 = vadd.xlane.f32.xlu0 %v1762
  %v1799 = vpop.xlane.xlu0 %1798
  %1800 = vadd.xlane.f32.xlu0 %v1763
  %v1801 = vpop.xlane.xlu0 %1800
  %1802 = vadd.xlane.f32.xlu0 %v1764
  %v1803 = vpop.xlane.xlu0 %1802
  %1804 = vadd.xlane.f32.xlu0 %v1765
  %v1805 = vpop.xlane.xlu0 %1804
  %1806 = vadd.xlane.f32.xlu0 %v1766
  %v1807 = vpop.xlane.xlu0 %1806
  %1808 = vadd.xlane.f32.xlu0 %v1767
  %v1809 = vpop.xlane.xlu0 %1808
  %1810 = vadd.xlane.f32.xlu0 %v1768
  %v1811 = vpop.xlane.xlu0 %1810
  %1812 = vadd.xlane.f32.xlu0 %v1769
  %v1813 = vpop.xlane.xlu0 %1812
  %1814 = vadd.xlane.f32.xlu0 %v1770
  %v1815 = vpop.xlane.xlu0 %1814
  %1816 = vadd.xlane.f32.xlu0 %v1771
  %v1817 = vpop.xlane.xlu0 %1816
  %1818 = vadd.xlane.f32.xlu0 %v1772
  %v1819 = vpop.xlane.xlu0 %1818
  %1820 = vadd.xlane.f32.xlu0 %v1773
  %v1821 = vpop.xlane.xlu0 %1820
  %1822 = vadd.xlane.f32.xlu0 %v1774
  %v1823 = vpop.xlane.xlu0 %1822
  %1824 = vadd.xlane.f32.xlu0 %v1775
  %v1825 = vpop.xlane.xlu0 %1824
  %1826 = vadd.xlane.f32.xlu0 %v1776
  %v1827 = vpop.xlane.xlu0 %1826
  %1828 = vadd.xlane.f32.xlu0 %v1777
  %v1829 = vpop.xlane.xlu0 %1828
  %1830 = vadd.xlane.f32.xlu0 %v1778
  %v1831 = vpop.xlane.xlu0 %1830
  %1832 = vadd.xlane.f32.xlu0 %v1779
  %v1833 = vpop.xlane.xlu0 %1832
  %1834 = vadd.xlane.f32.xlu0 %v1780
  %v1835 = vpop.xlane.xlu0 %1834
  %1836 = vadd.xlane.f32.xlu0 %v1781
  %v1837 = vpop.xlane.xlu0 %1836
  %1838 = vadd.xlane.f32.xlu0 %v1782
  %v1839 = vpop.xlane.xlu0 %1838
  %1840 = vadd.xlane.f32.xlu0 %v1783
  %v1841 = vpop.xlane.xlu0 %1840
  %1842 = vadd.xlane.f32.xlu0 %v1784
  %v1843 = vpop.xlane.xlu0 %1842
  %1844 = vadd.xlane.f32.xlu0 %v1785
  %v1845 = vpop.xlane.xlu0 %1844
  %1846 = vadd.xlane.f32.xlu0 %v1786
  %v1847 = vpop.xlane.xlu0 %1846
  %1848 = vadd.xlane.f32.xlu0 %v1787
  %v1849 = vpop.xlane.xlu0 %1848
  %1850 = vadd.xlane.f32.xlu0 %v1788
  %v1851 = vpop.xlane.xlu0 %1850
  %1852 = vadd.xlane.f32.xlu0 %v1789
  %v1853 = vpop.xlane.xlu0 %1852
  %v1854 = vmul.f32 %v1791, %v1693
  %v1855 = vmul.f32 %v1793, %v1693
  %v1856 = vmul.f32 %v1795, %v1693
  %v1857 = vmul.f32 %v1797, %v1693
  %v1858 = vmul.f32 %v1799, %v1693
  %v1859 = vmul.f32 %v1801, %v1693
  %v1860 = vmul.f32 %v1803, %v1693
  %v1861 = vmul.f32 %v1805, %v1693
  %v1862 = vmul.f32 %v1807, %v1693
  %v1863 = vmul.f32 %v1809, %v1693
  %v1864 = vmul.f32 %v1811, %v1693
  %v1865 = vmul.f32 %v1813, %v1693
  %v1866 = vmul.f32 %v1815, %v1693
  %v1867 = vmul.f32 %v1817, %v1693
  %v1868 = vmul.f32 %v1819, %v1693
  %v1869 = vmul.f32 %v1821, %v1693
  %v1870 = vmul.f32 %v1823, %v1693
  %v1871 = vmul.f32 %v1825, %v1693
  %v1872 = vmul.f32 %v1827, %v1693
  %v1873 = vmul.f32 %v1829, %v1693
  %v1874 = vmul.f32 %v1831, %v1693
  %v1875 = vmul.f32 %v1833, %v1693
  %v1876 = vmul.f32 %v1835, %v1693
  %v1877 = vmul.f32 %v1837, %v1693
  %v1878 = vmul.f32 %v1839, %v1693
  %v1879 = vmul.f32 %v1841, %v1693
  %v1880 = vmul.f32 %v1843, %v1693
  %v1881 = vmul.f32 %v1845, %v1693
  %v1882 = vmul.f32 %v1847, %v1693
  %v1883 = vmul.f32 %v1849, %v1693
  %v1884 = vmul.f32 %v1851, %v1693
  %v1885 = vmul.f32 %v1853, %v1693
  %v1886 = vadd.f32 %v1854, 1e-06
  %v1887 = vadd.f32 %v1855, 1e-06
  %v1888 = vadd.f32 %v1856, 1e-06
  %v1889 = vadd.f32 %v1857, 1e-06
  %v1890 = vadd.f32 %v1858, 1e-06
  %v1891 = vadd.f32 %v1859, 1e-06
  %v1892 = vadd.f32 %v1860, 1e-06
  %v1893 = vadd.f32 %v1861, 1e-06
  %v1894 = vadd.f32 %v1862, 1e-06
  %v1895 = vadd.f32 %v1863, 1e-06
  %v1896 = vadd.f32 %v1864, 1e-06
  %v1897 = vadd.f32 %v1865, 1e-06
  %v1898 = vadd.f32 %v1866, 1e-06
  %v1899 = vadd.f32 %v1867, 1e-06
  %v1900 = vadd.f32 %v1868, 1e-06
  %v1901 = vadd.f32 %v1869, 1e-06
  %v1902 = vadd.f32 %v1870, 1e-06
  %v1903 = vadd.f32 %v1871, 1e-06
  %v1904 = vadd.f32 %v1872, 1e-06
  %v1905 = vadd.f32 %v1873, 1e-06
  %v1906 = vadd.f32 %v1874, 1e-06
  %v1907 = vadd.f32 %v1875, 1e-06
  %v1908 = vadd.f32 %v1876, 1e-06
  %v1909 = vadd.f32 %v1877, 1e-06
  %v1910 = vadd.f32 %v1878, 1e-06
  %v1911 = vadd.f32 %v1879, 1e-06
  %v1912 = vadd.f32 %v1880, 1e-06
  %v1913 = vadd.f32 %v1881, 1e-06
  %v1914 = vadd.f32 %v1882, 1e-06
  %v1915 = vadd.f32 %v1883, 1e-06
  %v1916 = vadd.f32 %v1884, 1e-06
  %v1917 = vadd.f32 %v1885, 1e-06
  %v1918 = vrsqrt.pop %v1886
  %v1919 = vrsqrt.pop %v1887
  %v1920 = vrsqrt.pop %v1888
  %v1921 = vrsqrt.pop %v1889
  %v1922 = vrsqrt.pop %v1890
  %v1923 = vrsqrt.pop %v1891
  %v1924 = vrsqrt.pop %v1892
  %v1925 = vrsqrt.pop %v1893
  %v1926 = vrsqrt.pop %v1894
  %v1927 = vrsqrt.pop %v1895
  %v1928 = vrsqrt.pop %v1896
  %v1929 = vrsqrt.pop %v1897
  %v1930 = vrsqrt.pop %v1898
  %v1931 = vrsqrt.pop %v1899
  %v1932 = vrsqrt.pop %v1900
  %v1933 = vrsqrt.pop %v1901
  %v1934 = vrsqrt.pop %v1902
  %v1935 = vrsqrt.pop %v1903
  %v1936 = vrsqrt.pop %v1904
  %v1937 = vrsqrt.pop %v1905
  %v1938 = vrsqrt.pop %v1906
  %v1939 = vrsqrt.pop %v1907
  %v1940 = vrsqrt.pop %v1908
  %v1941 = vrsqrt.pop %v1909
  %v1942 = vrsqrt.pop %v1910
  %v1943 = vrsqrt.pop %v1911
  %v1944 = vrsqrt.pop %v1912
  %v1945 = vrsqrt.pop %v1913
  %v1946 = vrsqrt.pop %v1914
  %v1947 = vrsqrt.pop %v1915
  %v1948 = vrsqrt.pop %v1916
  %v1949 = vrsqrt.pop %v1917
  %v1950 = vmul.f32 %v1726, %v1918
  %v1951 = vmul.f32 %v1727, %v1919
  %v1952 = vmul.f32 %v1728, %v1920
  %v1953 = vmul.f32 %v1729, %v1921
  %v1954 = vmul.f32 %v1730, %v1922
  %v1955 = vmul.f32 %v1731, %v1923
  %v1956 = vmul.f32 %v1732, %v1924
  %v1957 = vmul.f32 %v1733, %v1925
  %v1958 = vmul.f32 %v1734, %v1926
  %v1959 = vmul.f32 %v1735, %v1927
  %v1960 = vmul.f32 %v1736, %v1928
  %v1961 = vmul.f32 %v1737, %v1929
  %v1962 = vmul.f32 %v1738, %v1930
  %v1963 = vmul.f32 %v1739, %v1931
  %v1964 = vmul.f32 %v1740, %v1932
  %v1965 = vmul.f32 %v1741, %v1933
  %v1966 = vmul.f32 %v1742, %v1934
  %v1967 = vmul.f32 %v1743, %v1935
  %v1968 = vmul.f32 %v1744, %v1936
  %v1969 = vmul.f32 %v1745, %v1937
  %v1970 = vmul.f32 %v1746, %v1938
  %v1971 = vmul.f32 %v1747, %v1939
  %v1972 = vmul.f32 %v1748, %v1940
  %v1973 = vmul.f32 %v1749, %v1941
  %v1974 = vmul.f32 %v1750, %v1942
  %v1975 = vmul.f32 %v1751, %v1943
  %v1976 = vmul.f32 %v1752, %v1944
  %v1977 = vmul.f32 %v1753, %v1945
  %v1978 = vmul.f32 %v1754, %v1946
  %v1979 = vmul.f32 %v1755, %v1947
  %v1980 = vmul.f32 %v1756, %v1948
  %v1981 = vmul.f32 %v1757, %v1949
  %v1982 = vld [vmem:[%s8] sm:$0x1]
  %v1984 = vlaneseq
  %v1985 = vshrl.u32 %v1984, 7
  %v1986 = vsub.s32 0, %v1985
  %v1987 = vrot.slane %v1982, %v1986
  %v1989 = vmul.f32 %v1950, %v1987
  %v1990 = vmul.f32 %v1951, %v1987
  %v1991 = vmul.f32 %v1952, %v1987
  %v1992 = vmul.f32 %v1953, %v1987
  %v1993 = vmul.f32 %v1954, %v1987
  %v1994 = vmul.f32 %v1955, %v1987
  %v1995 = vmul.f32 %v1956, %v1987
  %v1996 = vmul.f32 %v1957, %v1987
  %v1997 = vmul.f32 %v1958, %v1987
  %v1998 = vmul.f32 %v1959, %v1987
  %v1999 = vmul.f32 %v1960, %v1987
  %v2000 = vmul.f32 %v1961, %v1987
  %v2001 = vmul.f32 %v1962, %v1987
  %v2002 = vmul.f32 %v1963, %v1987
  %v2003 = vmul.f32 %v1964, %v1987
  %v2004 = vmul.f32 %v1965, %v1987
  %v2005 = vmul.f32 %v1966, %v1987
  %v2006 = vmul.f32 %v1967, %v1987
  %v2007 = vmul.f32 %v1968, %v1987
  %v2008 = vmul.f32 %v1969, %v1987
  %v2009 = vmul.f32 %v1970, %v1987
  %v2010 = vmul.f32 %v1971, %v1987
  %v2011 = vmul.f32 %v1972, %v1987
  %v2012 = vmul.f32 %v1973, %v1987
  %v2013 = vmul.f32 %v1974, %v1987
  %v2014 = vmul.f32 %v1975, %v1987
  %v2015 = vmul.f32 %v1976, %v1987
  %v2016 = vmul.f32 %v1977, %v1987
  %v2017 = vmul.f32 %v1978, %v1987
  %v2018 = vmul.f32 %v1979, %v1987
  %v2019 = vmul.f32 %v1980, %v1987
  %v2020 = vmul.f32 %v1981, %v1987
  %v2021 = vld [vmem:[%s9] sm:$0x1]
  %v2023 = vlaneseq
  %v2024 = vshrl.u32 %v2023, 7
  %v2025 = vsub.s32 0, %v2024
  %v2026 = vrot.slane %v2021, %v2025
  %v2028 = vadd.f32 %v1989, %v2026
  %v2029 = vadd.f32 %v1990, %v2026
  %v2030 = vadd.f32 %v1991, %v2026
  %v2031 = vadd.f32 %v1992, %v2026
  %v2032 = vadd.f32 %v1993, %v2026
  %v2033 = vadd.f32 %v1994, %v2026
  %v2034 = vadd.f32 %v1995, %v2026
  %v2035 = vadd.f32 %v1996, %v2026
  %v2036 = vadd.f32 %v1997, %v2026
  %v2037 = vadd.f32 %v1998, %v2026
  %v2038 = vadd.f32 %v1999, %v2026
  %v2039 = vadd.f32 %v2000, %v2026
  %v2040 = vadd.f32 %v2001, %v2026
  %v2041 = vadd.f32 %v2002, %v2026
  %v2042 = vadd.f32 %v2003, %v2026
  %v2043 = vadd.f32 %v2004, %v2026
  %v2044 = vadd.f32 %v2005, %v2026
  %v2045 = vadd.f32 %v2006, %v2026
  %v2046 = vadd.f32 %v2007, %v2026
  %v2047 = vadd.f32 %v2008, %v2026
  %v2048 = vadd.f32 %v2009, %v2026
  %v2049 = vadd.f32 %v2010, %v2026
  %v2050 = vadd.f32 %v2011, %v2026
  %v2051 = vadd.f32 %v2012, %v2026
  %v2052 = vadd.f32 %v2013, %v2026
  %v2053 = vadd.f32 %v2014, %v2026
  %v2054 = vadd.f32 %v2015, %v2026
  %v2055 = vadd.f32 %v2016, %v2026
  %v2056 = vadd.f32 %v2017, %v2026
  %v2057 = vadd.f32 %v2018, %v2026
  %v2058 = vadd.f32 %v2019, %v2026
  %v2059 = vadd.f32 %v2020, %v2026
  %v2060 = vmax.f32 %v2028, 0.0
  %v2061 = vmax.f32 %v2029, 0.0
  %v2062 = vmax.f32 %v2030, 0.0
  %v2063 = vmax.f32 %v2031, 0.0
  %v2064 = vmax.f32 %v2032, 0.0
  %v2065 = vmax.f32 %v2033, 0.0
  %v2066 = vmax.f32 %v2034, 0.0
  %v2067 = vmax.f32 %v2035, 0.0
  %v2068 = vmax.f32 %v2036, 0.0
  %v2069 = vmax.f32 %v2037, 0.0
  %v2070 = vmax.f32 %v2038, 0.0
  %v2071 = vmax.f32 %v2039, 0.0
  %v2072 = vmax.f32 %v2040, 0.0
  %v2073 = vmax.f32 %v2041, 0.0
  %v2074 = vmax.f32 %v2042, 0.0
  %v2075 = vmax.f32 %v2043, 0.0
  %v2076 = vmax.f32 %v2044, 0.0
  %v2077 = vmax.f32 %v2045, 0.0
  %v2078 = vmax.f32 %v2046, 0.0
  %v2079 = vmax.f32 %v2047, 0.0
  %v2080 = vmax.f32 %v2048, 0.0
  %v2081 = vmax.f32 %v2049, 0.0
  %v2082 = vmax.f32 %v2050, 0.0
  %v2083 = vmax.f32 %v2051, 0.0
  %v2084 = vmax.f32 %v2052, 0.0
  %v2085 = vmax.f32 %v2053, 0.0
  %v2086 = vmax.f32 %v2054, 0.0
  %v2087 = vmax.f32 %v2055, 0.0
  %v2088 = vmax.f32 %v2056, 0.0
  %v2089 = vmax.f32 %v2057, 0.0
  %v2090 = vmax.f32 %v2058, 0.0
  %v2091 = vmax.f32 %v2059, 0.0
  %v2092 = vld [vmem:[%s10] sm:$0xff]
  %v2093 = vld [vmem:[%s10 + $0x8] sm:$0xff]
  %v2094 = vld [vmem:[%s10 + $0x10] sm:$0xff]
  %v2095 = vld [vmem:[%s10 + $0x18] sm:$0xff]
  %v2096 = vld [vmem:[%s10 + $0x20] sm:$0xff]
  %v2097 = vld [vmem:[%s10 + $0x28] sm:$0xff]
  %v2098 = vld [vmem:[%s10 + $0x30] sm:$0xff]
  %v2099 = vld [vmem:[%s10 + $0x38] sm:$0xff]
  %v2100 = vld [vmem:[%s10 + $0x40] sm:$0xff]
  %v2101 = vld [vmem:[%s10 + $0x48] sm:$0xff]
  %v2102 = vld [vmem:[%s10 + $0x50] sm:$0xff]
  %v2103 = vld [vmem:[%s10 + $0x58] sm:$0xff]
  %v2104 = vld [vmem:[%s10 + $0x60] sm:$0xff]
  %v2105 = vld [vmem:[%s10 + $0x68] sm:$0xff]
  %v2106 = vld [vmem:[%s10 + $0x70] sm:$0xff]
  %v2107 = vld [vmem:[%s10 + $0x78] sm:$0xff]
  %v2108 = vld [vmem:[%s11] sm:$0x1]
  %v2110 = vlaneseq
  %v2111 = vshrl.u32 %v2110, 7
  %v2112 = vsub.s32 0, %v2111
  %v2113 = vrot.slane %v2108, %v2112
  %2115 = vmatprep.subr.mxu0 0.0
  %2116 = vmatpush1.msra.mxu0 %v2107
  %2117 = vmatprep.subr.mxu0 0.0
  %2118 = vmatpush1.msra.mxu0 %v2106
  %2119 = vmatprep.subr.mxu0 0.0
  %2120 = vmatpush1.msra.mxu0 %v2105
  %2121 = vmatprep.subr.mxu0 0.0
  %2122 = vmatpush1.msra.mxu0 %v2104
  %2123 = vmatprep.subr.mxu0 0.0
  %2124 = vmatpush1.msra.mxu0 %v2103
  %2125 = vmatprep.subr.mxu0 0.0
  %2126 = vmatpush1.msra.mxu0 %v2102
  %2127 = vmatprep.subr.mxu0 0.0
  %2128 = vmatpush1.msra.mxu0 %v2101
  %2129 = vmatprep.subr.mxu0 0.0
  %2130 = vmatpush1.msra.mxu0 %v2100
  %2131 = vmatprep.subr.mxu0 0.0
  %2132 = vmatpush1.msra.mxu0 %v2099
  %2133 = vmatprep.subr.mxu0 0.0
  %2134 = vmatpush1.msra.mxu0 %v2098
  %2135 = vmatprep.subr.mxu0 0.0
  %2136 = vmatpush1.msra.mxu0 %v2097
  %2137 = vmatprep.subr.mxu0 0.0
  %2138 = vmatpush1.msra.mxu0 %v2096
  %2139 = vmatprep.subr.mxu0 0.0
  %2140 = vmatpush1.msra.mxu0 %v2095
  %2141 = vmatprep.subr.mxu0 0.0
  %2142 = vmatpush1.msra.mxu0 %v2094
  %2143 = vmatprep.subr.mxu0 0.0
  %2144 = vmatpush1.msra.mxu0 %v2093
  %2145 = vmatprep.subr.mxu0 0.0
  %2146 = vmatpush1.msra.mxu0 %v2092
  %2147 = vmatprep.subr.mxu0 0.0
  %2148 = vmatpush2.msra.mxu0 0.0
  %2149 = vmatprep.subr.mxu0 0.0
  %2150 = vmatpush2.msra.mxu0 0.0
  %2151 = vmatprep.subr.mxu0 0.0
  %2152 = vmatpush2.msra.mxu0 0.0
  %2153 = vmatprep.subr.mxu0 0.0
  %2154 = vmatpush2.msra.mxu0 0.0
  %2155 = vmatprep.subr.mxu0 0.0
  %2156 = vmatpush2.msra.mxu0 0.0
  %2157 = vmatprep.subr.mxu0 0.0
  %2158 = vmatpush2.msra.mxu0 0.0
  %2159 = vmatprep.subr.mxu0 0.0
  %2160 = vmatpush2.msra.mxu0 0.0
  %2161 = vmatprep.subr.mxu0 0.0
  %2162 = vmatpush2.msra.mxu0 0.0
  %2163 = vmatprep.subr.mxu0 0.0
  %2164 = vmatpush2.msra.mxu0 0.0
  %2165 = vmatprep.subr.mxu0 0.0
  %2166 = vmatpush2.msra.mxu0 0.0
  %2167 = vmatprep.subr.mxu0 0.0
  %2168 = vmatpush2.msra.mxu0 0.0
  %2169 = vmatprep.subr.mxu0 0.0
  %2170 = vmatpush2.msra.mxu0 0.0
  %2171 = vmatprep.subr.mxu0 0.0
  %2172 = vmatpush2.msra.mxu0 0.0
  %2173 = vmatprep.subr.mxu0 0.0
  %2174 = vmatpush2.msra.mxu0 0.0
  %2175 = vmatprep.subr.mxu0 0.0
  %2176 = vmatpush2.msra.mxu0 0.0
  %2177 = vmatprep.subr.mxu0 0.0
  %2178 = vmatpush2.msra.mxu0 0.0
  %2179 = vmatprep.mubr.f32.mxu0 0.0
  %2180 = vmatmul.mubr.f32.gmra.mxu0 %v2060
  %v2181 = vpop.f32.mrf.mxu0
  %v2182 = vadd.f32 %v2113, %v2181
  %v2183 = vpop.f32.mrf.mxu0
  %2184 = vmatprep.mubr.f32.mxu0 0.0
  %2185 = vmatmul.mubr.f32.gmra.mxu0 %v2061
  %v2186 = vpop.f32.mrf.mxu0
  %v2187 = vadd.f32 %v2113, %v2186
  %v2188 = vpop.f32.mrf.mxu0
  %2189 = vmatprep.mubr.f32.mxu0 0.0
  %2190 = vmatmul.mubr.f32.gmra.mxu0 %v2062
  %v2191 = vpop.f32.mrf.mxu0
  %v2192 = vadd.f32 %v2113, %v2191
  %v2193 = vpop.f32.mrf.mxu0
  %2194 = vmatprep.mubr.f32.mxu0 0.0
  %2195 = vmatmul.mubr.f32.gmra.mxu0 %v2063
  %v2196 = vpop.f32.mrf.mxu0
  %v2197 = vadd.f32 %v2113, %v2196
  %v2198 = vpop.f32.mrf.mxu0
  %2199 = vmatprep.mubr.f32.mxu0 0.0
  %2200 = vmatmul.mubr.f32.gmra.mxu0 %v2064
  %v2201 = vpop.f32.mrf.mxu0
  %v2202 = vadd.f32 %v2113, %v2201
  %v2203 = vpop.f32.mrf.mxu0
  %2204 = vmatprep.mubr.f32.mxu0 0.0
  %2205 = vmatmul.mubr.f32.gmra.mxu0 %v2065
  %v2206 = vpop.f32.mrf.mxu0
  %v2207 = vadd.f32 %v2113, %v2206
  %v2208 = vpop.f32.mrf.mxu0
  %2209 = vmatprep.mubr.f32.mxu0 0.0
  %2210 = vmatmul.mubr.f32.gmra.mxu0 %v2066
  %v2211 = vpop.f32.mrf.mxu0
  %v2212 = vadd.f32 %v2113, %v2211
  %v2213 = vpop.f32.mrf.mxu0
  %2214 = vmatprep.mubr.f32.mxu0 0.0
  %2215 = vmatmul.mubr.f32.gmra.mxu0 %v2067
  %v2216 = vpop.f32.mrf.mxu0
  %v2217 = vadd.f32 %v2113, %v2216
  %v2218 = vpop.f32.mrf.mxu0
  %2219 = vmatprep.mubr.f32.mxu0 0.0
  %2220 = vmatmul.mubr.f32.gmra.mxu0 %v2068
  %v2221 = vpop.f32.mrf.mxu0
  %v2222 = vadd.f32 %v2113, %v2221
  %v2223 = vpop.f32.mrf.mxu0
  %2224 = vmatprep.mubr.f32.mxu0 0.0
  %2225 = vmatmul.mubr.f32.gmra.mxu0 %v2069
  %v2226 = vpop.f32.mrf.mxu0
  %v2227 = vadd.f32 %v2113, %v2226
  %v2228 = vpop.f32.mrf.mxu0
  %2229 = vmatprep.mubr.f32.mxu0 0.0
  %2230 = vmatmul.mubr.f32.gmra.mxu0 %v2070
  %v2231 = vpop.f32.mrf.mxu0
  %v2232 = vadd.f32 %v2113, %v2231
  %v2233 = vpop.f32.mrf.mxu0
  %2234 = vmatprep.mubr.f32.mxu0 0.0
  %2235 = vmatmul.mubr.f32.gmra.mxu0 %v2071
  %v2236 = vpop.f32.mrf.mxu0
  %v2237 = vadd.f32 %v2113, %v2236
  %v2238 = vpop.f32.mrf.mxu0
  %2239 = vmatprep.mubr.f32.mxu0 0.0
  %2240 = vmatmul.mubr.f32.gmra.mxu0 %v2072
  %v2241 = vpop.f32.mrf.mxu0
  %v2242 = vadd.f32 %v2113, %v2241
  %v2243 = vpop.f32.mrf.mxu0
  %2244 = vmatprep.mubr.f32.mxu0 0.0
  %2245 = vmatmul.mubr.f32.gmra.mxu0 %v2073
  %v2246 = vpop.f32.mrf.mxu0
  %v2247 = vadd.f32 %v2113, %v2246
  %v2248 = vpop.f32.mrf.mxu0
  %2249 = vmatprep.mubr.f32.mxu0 0.0
  %2250 = vmatmul.mubr.f32.gmra.mxu0 %v2074
  %v2251 = vpop.f32.mrf.mxu0
  %v2252 = vadd.f32 %v2113, %v2251
  %v2253 = vpop.f32.mrf.mxu0
  %2254 = vmatprep.mubr.f32.mxu0 0.0
  %2255 = vmatmul.mubr.f32.gmra.mxu0 %v2075
  %v2256 = vpop.f32.mrf.mxu0
  %v2257 = vadd.f32 %v2113, %v2256
  %v2258 = vpop.f32.mrf.mxu0
  %2259 = vmatprep.mubr.f32.mxu0 0.0
  %2260 = vmatmul.mubr.f32.gmra.mxu0 %v2076
  %v2261 = vpop.f32.mrf.mxu0
  %v2262 = vadd.f32 %v2113, %v2261
  %v2263 = vpop.f32.mrf.mxu0
  %2264 = vmatprep.mubr.f32.mxu0 0.0
  %2265 = vmatmul.mubr.f32.gmra.mxu0 %v2077
  %v2266 = vpop.f32.mrf.mxu0
  %v2267 = vadd.f32 %v2113, %v2266
  %v2268 = vpop.f32.mrf.mxu0
  %2269 = vmatprep.mubr.f32.mxu0 0.0
  %2270 = vmatmul.mubr.f32.gmra.mxu0 %v2078
  %v2271 = vpop.f32.mrf.mxu0
  %v2272 = vadd.f32 %v2113, %v2271
  %v2273 = vpop.f32.mrf.mxu0
  %2274 = vmatprep.mubr.f32.mxu0 0.0
  %2275 = vmatmul.mubr.f32.gmra.mxu0 %v2079
  %v2276 = vpop.f32.mrf.mxu0
  %v2277 = vadd.f32 %v2113, %v2276
  %v2278 = vpop.f32.mrf.mxu0
  %2279 = vmatprep.mubr.f32.mxu0 0.0
  %2280 = vmatmul.mubr.f32.gmra.mxu0 %v2080
  %v2281 = vpop.f32.mrf.mxu0
  %v2282 = vadd.f32 %v2113, %v2281
  %v2283 = vpop.f32.mrf.mxu0
  %2284 = vmatprep.mubr.f32.mxu0 0.0
  %2285 = vmatmul.mubr.f32.gmra.mxu0 %v2081
  %v2286 = vpop.f32.mrf.mxu0
  %v2287 = vadd.f32 %v2113, %v2286
  %v2288 = vpop.f32.mrf.mxu0
  %2289 = vmatprep.mubr.f32.mxu0 0.0
  %2290 = vmatmul.mubr.f32.gmra.mxu0 %v2082
  %v2291 = vpop.f32.mrf.mxu0
  %v2292 = vadd.f32 %v2113, %v2291
  %v2293 = vpop.f32.mrf.mxu0
  %2294 = vmatprep.mubr.f32.mxu0 0.0
  %2295 = vmatmul.mubr.f32.gmra.mxu0 %v2083
  %v2296 = vpop.f32.mrf.mxu0
  %v2297 = vadd.f32 %v2113, %v2296
  %v2298 = vpop.f32.mrf.mxu0
  %2299 = vmatprep.mubr.f32.mxu0 0.0
  %2300 = vmatmul.mubr.f32.gmra.mxu0 %v2084
  %v2301 = vpop.f32.mrf.mxu0
  %v2302 = vadd.f32 %v2113, %v2301
  %v2303 = vpop.f32.mrf.mxu0
  %2304 = vmatprep.mubr.f32.mxu0 0.0
  %2305 = vmatmul.mubr.f32.gmra.mxu0 %v2085
  %v2306 = vpop.f32.mrf.mxu0
  %v2307 = vadd.f32 %v2113, %v2306
  %v2308 = vpop.f32.mrf.mxu0
  %2309 = vmatprep.mubr.f32.mxu0 0.0
  %2310 = vmatmul.mubr.f32.gmra.mxu0 %v2086
  %v2311 = vpop.f32.mrf.mxu0
  %v2312 = vadd.f32 %v2113, %v2311
  %v2313 = vpop.f32.mrf.mxu0
  %2314 = vmatprep.mubr.f32.mxu0 0.0
  %2315 = vmatmul.mubr.f32.gmra.mxu0 %v2087
  %v2316 = vpop.f32.mrf.mxu0
  %v2317 = vadd.f32 %v2113, %v2316
  %v2318 = vpop.f32.mrf.mxu0
  %2319 = vmatprep.mubr.f32.mxu0 0.0
  %2320 = vmatmul.mubr.f32.gmra.mxu0 %v2088
  %v2321 = vpop.f32.mrf.mxu0
  %v2322 = vadd.f32 %v2113, %v2321
  %v2323 = vpop.f32.mrf.mxu0
  %2324 = vmatprep.mubr.f32.mxu0 0.0
  %2325 = vmatmul.mubr.f32.gmra.mxu0 %v2089
  %v2326 = vpop.f32.mrf.mxu0
  %v2327 = vadd.f32 %v2113, %v2326
  %v2328 = vpop.f32.mrf.mxu0
  %2329 = vmatprep.mubr.f32.mxu0 0.0
  %2330 = vmatmul.mubr.f32.gmra.mxu0 %v2090
  %v2331 = vpop.f32.mrf.mxu0
  %v2332 = vadd.f32 %v2113, %v2331
  %v2333 = vpop.f32.mrf.mxu0
  %2334 = vmatprep.mubr.f32.mxu0 0.0
  %2335 = vmatmul.mubr.f32.gmra.mxu0 %v2091
  %v2336 = vpop.f32.mrf.mxu0
  %v2337 = vadd.f32 %v2113, %v2336
  %v2338 = vpop.f32.mrf.mxu0
  %2339 = vdwg.mxu0
  %2372 = vrot.lane.b32.xlu0 %v107, 32
  %v2373 = vpop.permute.xlu0 %2372
  %2374 = vrot.lane.b32.xlu0 %v108, 32
  %v2375 = vpop.permute.xlu0 %2374
  %2376 = vrot.lane.b32.xlu0 %v109, 32
  %v2377 = vpop.permute.xlu0 %2376
  %2378 = vrot.lane.b32.xlu0 %v110, 32
  %v2379 = vpop.permute.xlu0 %2378
  %2380 = vrot.lane.b32.xlu0 %v111, 32
  %v2381 = vpop.permute.xlu0 %2380
  %2382 = vrot.lane.b32.xlu0 %v112, 32
  %v2383 = vpop.permute.xlu0 %2382
  %2384 = vrot.lane.b32.xlu0 %v113, 32
  %v2385 = vpop.permute.xlu0 %2384
  %2386 = vrot.lane.b32.xlu0 %v114, 32
  %v2387 = vpop.permute.xlu0 %2386
  %2388 = vrot.lane.b32.xlu0 %v115, 32
  %v2389 = vpop.permute.xlu0 %2388
  %2390 = vrot.lane.b32.xlu0 %v116, 32
  %v2391 = vpop.permute.xlu0 %2390
  %2392 = vrot.lane.b32.xlu0 %v117, 32
  %v2393 = vpop.permute.xlu0 %2392
  %2394 = vrot.lane.b32.xlu0 %v118, 32
  %v2395 = vpop.permute.xlu0 %2394
  %2396 = vrot.lane.b32.xlu0 %v119, 32
  %v2397 = vpop.permute.xlu0 %2396
  %2398 = vrot.lane.b32.xlu0 %v120, 32
  %v2399 = vpop.permute.xlu0 %2398
  %2400 = vrot.lane.b32.xlu0 %v121, 32
  %v2401 = vpop.permute.xlu0 %2400
  %2402 = vrot.lane.b32.xlu0 %v122, 32
  %v2403 = vpop.permute.xlu0 %2402
  %2404 = vrot.lane.b32.xlu0 %v123, 32
  %v2405 = vpop.permute.xlu0 %2404
  %2406 = vrot.lane.b32.xlu0 %v124, 32
  %v2407 = vpop.permute.xlu0 %2406
  %2408 = vrot.lane.b32.xlu0 %v125, 32
  %v2409 = vpop.permute.xlu0 %2408
  %2410 = vrot.lane.b32.xlu0 %v126, 32
  %v2411 = vpop.permute.xlu0 %2410
  %2412 = vrot.lane.b32.xlu0 %v127, 32
  %v2413 = vpop.permute.xlu0 %2412
  %2414 = vrot.lane.b32.xlu0 %v128, 32
  %v2415 = vpop.permute.xlu0 %2414
  %2416 = vrot.lane.b32.xlu0 %v129, 32
  %v2417 = vpop.permute.xlu0 %2416
  %2418 = vrot.lane.b32.xlu0 %v130, 32
  %v2419 = vpop.permute.xlu0 %2418
  %2420 = vrot.lane.b32.xlu0 %v131, 32
  %v2421 = vpop.permute.xlu0 %2420
  %2422 = vrot.lane.b32.xlu0 %v132, 32
  %v2423 = vpop.permute.xlu0 %2422
  %2424 = vrot.lane.b32.xlu0 %v133, 32
  %v2425 = vpop.permute.xlu0 %2424
  %2426 = vrot.lane.b32.xlu0 %v134, 32
  %v2427 = vpop.permute.xlu0 %2426
  %2428 = vrot.lane.b32.xlu0 %v135, 32
  %v2429 = vpop.permute.xlu0 %2428
  %2430 = vrot.lane.b32.xlu0 %v136, 32
  %v2431 = vpop.permute.xlu0 %2430
  %2432 = vrot.lane.b32.xlu0 %v137, 32
  %v2433 = vpop.permute.xlu0 %2432
  %2434 = vrot.lane.b32.xlu0 %v138, 32
  %v2435 = vpop.permute.xlu0 %2434
  %v2468 = vmul.f32 %v1566, %v2373
  %v2469 = vmul.f32 %v1568, %v2375
  %v2470 = vmul.f32 %v1570, %v2377
  %v2471 = vmul.f32 %v1572, %v2379
  %v2472 = vmul.f32 %v1574, %v2381
  %v2473 = vmul.f32 %v1576, %v2383
  %v2474 = vmul.f32 %v1578, %v2385
  %v2475 = vmul.f32 %v1580, %v2387
  %v2476 = vmul.f32 %v1582, %v2389
  %v2477 = vmul.f32 %v1584, %v2391
  %v2478 = vmul.f32 %v1586, %v2393
  %v2479 = vmul.f32 %v1588, %v2395
  %v2480 = vmul.f32 %v1590, %v2397
  %v2481 = vmul.f32 %v1592, %v2399
  %v2482 = vmul.f32 %v1594, %v2401
  %v2483 = vmul.f32 %v1596, %v2403
  %v2484 = vmul.f32 %v1598, %v2405
  %v2485 = vmul.f32 %v1600, %v2407
  %v2486 = vmul.f32 %v1602, %v2409
  %v2487 = vmul.f32 %v1604, %v2411
  %v2488 = vmul.f32 %v1606, %v2413
  %v2489 = vmul.f32 %v1608, %v2415
  %v2490 = vmul.f32 %v1610, %v2417
  %v2491 = vmul.f32 %v1612, %v2419
  %v2492 = vmul.f32 %v1614, %v2421
  %v2493 = vmul.f32 %v1616, %v2423
  %v2494 = vmul.f32 %v1618, %v2425
  %v2495 = vmul.f32 %v1620, %v2427
  %v2496 = vmul.f32 %v1622, %v2429
  %v2497 = vmul.f32 %v1624, %v2431
  %v2498 = vmul.f32 %v1626, %v2433
  %v2499 = vmul.f32 %v1628, %v2435
  %v2500 = vmul.f32 %v1566, %v2182
  %v2501 = vmul.f32 %v1568, %v2187
  %v2502 = vmul.f32 %v1570, %v2192
  %v2503 = vmul.f32 %v1572, %v2197
  %v2504 = vmul.f32 %v1574, %v2202
  %v2505 = vmul.f32 %v1576, %v2207
  %v2506 = vmul.f32 %v1578, %v2212
  %v2507 = vmul.f32 %v1580, %v2217
  %v2508 = vmul.f32 %v1582, %v2222
  %v2509 = vmul.f32 %v1584, %v2227
  %v2510 = vmul.f32 %v1586, %v2232
  %v2511 = vmul.f32 %v1588, %v2237
  %v2512 = vmul.f32 %v1590, %v2242
  %v2513 = vmul.f32 %v1592, %v2247
  %v2514 = vmul.f32 %v1594, %v2252
  %v2515 = vmul.f32 %v1596, %v2257
  %v2516 = vmul.f32 %v1598, %v2262
  %v2517 = vmul.f32 %v1600, %v2267
  %v2518 = vmul.f32 %v1602, %v2272
  %v2519 = vmul.f32 %v1604, %v2277
  %v2520 = vmul.f32 %v1606, %v2282
  %v2521 = vmul.f32 %v1608, %v2287
  %v2522 = vmul.f32 %v1610, %v2292
  %v2523 = vmul.f32 %v1612, %v2297
  %v2524 = vmul.f32 %v1614, %v2302
  %v2525 = vmul.f32 %v1616, %v2307
  %v2526 = vmul.f32 %v1618, %v2312
  %v2527 = vmul.f32 %v1620, %v2317
  %v2528 = vmul.f32 %v1622, %v2322
  %v2529 = vmul.f32 %v1624, %v2327
  %v2530 = vmul.f32 %v1626, %v2332
  %v2531 = vmul.f32 %v1628, %v2337
  %2564 = vrot.lane.b32.xlu0 %v2500, 32
  %v2565 = vpop.permute.xlu0 %2564
  %2566 = vrot.lane.b32.xlu0 %v2501, 32
  %v2567 = vpop.permute.xlu0 %2566
  %2568 = vrot.lane.b32.xlu0 %v2502, 32
  %v2569 = vpop.permute.xlu0 %2568
  %2570 = vrot.lane.b32.xlu0 %v2503, 32
  %v2571 = vpop.permute.xlu0 %2570
  %2572 = vrot.lane.b32.xlu0 %v2504, 32
  %v2573 = vpop.permute.xlu0 %2572
  %2574 = vrot.lane.b32.xlu0 %v2505, 32
  %v2575 = vpop.permute.xlu0 %2574
  %2576 = vrot.lane.b32.xlu0 %v2506, 32
  %v2577 = vpop.permute.xlu0 %2576
  %2578 = vrot.lane.b32.xlu0 %v2507, 32
  %v2579 = vpop.permute.xlu0 %2578
  %2580 = vrot.lane.b32.xlu0 %v2508, 32
  %v2581 = vpop.permute.xlu0 %2580
  %2582 = vrot.lane.b32.xlu0 %v2509, 32
  %v2583 = vpop.permute.xlu0 %2582
  %2584 = vrot.lane.b32.xlu0 %v2510, 32
  %v2585 = vpop.permute.xlu0 %2584
  %2586 = vrot.lane.b32.xlu0 %v2511, 32
  %v2587 = vpop.permute.xlu0 %2586
  %2588 = vrot.lane.b32.xlu0 %v2512, 32
  %v2589 = vpop.permute.xlu0 %2588
  %2590 = vrot.lane.b32.xlu0 %v2513, 32
  %v2591 = vpop.permute.xlu0 %2590
  %2592 = vrot.lane.b32.xlu0 %v2514, 32
  %v2593 = vpop.permute.xlu0 %2592
  %2594 = vrot.lane.b32.xlu0 %v2515, 32
  %v2595 = vpop.permute.xlu0 %2594
  %2596 = vrot.lane.b32.xlu0 %v2516, 32
  %v2597 = vpop.permute.xlu0 %2596
  %2598 = vrot.lane.b32.xlu0 %v2517, 32
  %v2599 = vpop.permute.xlu0 %2598
  %2600 = vrot.lane.b32.xlu0 %v2518, 32
  %v2601 = vpop.permute.xlu0 %2600
  %2602 = vrot.lane.b32.xlu0 %v2519, 32
  %v2603 = vpop.permute.xlu0 %2602
  %2604 = vrot.lane.b32.xlu0 %v2520, 32
  %v2605 = vpop.permute.xlu0 %2604
  %2606 = vrot.lane.b32.xlu0 %v2521, 32
  %v2607 = vpop.permute.xlu0 %2606
  %2608 = vrot.lane.b32.xlu0 %v2522, 32
  %v2609 = vpop.permute.xlu0 %2608
  %2610 = vrot.lane.b32.xlu0 %v2523, 32
  %v2611 = vpop.permute.xlu0 %2610
  %2612 = vrot.lane.b32.xlu0 %v2524, 32
  %v2613 = vpop.permute.xlu0 %2612
  %2614 = vrot.lane.b32.xlu0 %v2525, 32
  %v2615 = vpop.permute.xlu0 %2614
  %2616 = vrot.lane.b32.xlu0 %v2526, 32
  %v2617 = vpop.permute.xlu0 %2616
  %2618 = vrot.lane.b32.xlu0 %v2527, 32
  %v2619 = vpop.permute.xlu0 %2618
  %2620 = vrot.lane.b32.xlu0 %v2528, 32
  %v2621 = vpop.permute.xlu0 %2620
  %2622 = vrot.lane.b32.xlu0 %v2529, 32
  %v2623 = vpop.permute.xlu0 %2622
  %2624 = vrot.lane.b32.xlu0 %v2530, 32
  %v2625 = vpop.permute.xlu0 %2624
  %2626 = vrot.lane.b32.xlu0 %v2531, 32
  %v2627 = vpop.permute.xlu0 %2626
  %v2660 = vadd.f32 %v2468, %v2565
  %v2661 = vadd.f32 %v2469, %v2567
  %v2662 = vadd.f32 %v2470, %v2569
  %v2663 = vadd.f32 %v2471, %v2571
  %v2664 = vadd.f32 %v2472, %v2573
  %v2665 = vadd.f32 %v2473, %v2575
  %v2666 = vadd.f32 %v2474, %v2577
  %v2667 = vadd.f32 %v2475, %v2579
  %v2668 = vadd.f32 %v2476, %v2581
  %v2669 = vadd.f32 %v2477, %v2583
  %v2670 = vadd.f32 %v2478, %v2585
  %v2671 = vadd.f32 %v2479, %v2587
  %v2672 = vadd.f32 %v2480, %v2589
  %v2673 = vadd.f32 %v2481, %v2591
  %v2674 = vadd.f32 %v2482, %v2593
  %v2675 = vadd.f32 %v2483, %v2595
  %v2676 = vadd.f32 %v2484, %v2597
  %v2677 = vadd.f32 %v2485, %v2599
  %v2678 = vadd.f32 %v2486, %v2601
  %v2679 = vadd.f32 %v2487, %v2603
  %v2680 = vadd.f32 %v2488, %v2605
  %v2681 = vadd.f32 %v2489, %v2607
  %v2682 = vadd.f32 %v2490, %v2609
  %v2683 = vadd.f32 %v2491, %v2611
  %v2684 = vadd.f32 %v2492, %v2613
  %v2685 = vadd.f32 %v2493, %v2615
  %v2686 = vadd.f32 %v2494, %v2617
  %v2687 = vadd.f32 %v2495, %v2619
  %v2688 = vadd.f32 %v2496, %v2621
  %v2689 = vadd.f32 %v2497, %v2623
  %v2690 = vadd.f32 %v2498, %v2625
  %v2691 = vadd.f32 %v2499, %v2627
  %2724 = vrot.lane.b32.xlu0 %v2660, 32
  %v2725 = vpop.permute.xlu0 %2724
  %2726 = vrot.lane.b32.xlu0 %v2661, 32
  %v2727 = vpop.permute.xlu0 %2726
  %2728 = vrot.lane.b32.xlu0 %v2662, 32
  %v2729 = vpop.permute.xlu0 %2728
  %2730 = vrot.lane.b32.xlu0 %v2663, 32
  %v2731 = vpop.permute.xlu0 %2730
  %2732 = vrot.lane.b32.xlu0 %v2664, 32
  %v2733 = vpop.permute.xlu0 %2732
  %2734 = vrot.lane.b32.xlu0 %v2665, 32
  %v2735 = vpop.permute.xlu0 %2734
  %2736 = vrot.lane.b32.xlu0 %v2666, 32
  %v2737 = vpop.permute.xlu0 %2736
  %2738 = vrot.lane.b32.xlu0 %v2667, 32
  %v2739 = vpop.permute.xlu0 %2738
  %2740 = vrot.lane.b32.xlu0 %v2668, 32
  %v2741 = vpop.permute.xlu0 %2740
  %2742 = vrot.lane.b32.xlu0 %v2669, 32
  %v2743 = vpop.permute.xlu0 %2742
  %2744 = vrot.lane.b32.xlu0 %v2670, 32
  %v2745 = vpop.permute.xlu0 %2744
  %2746 = vrot.lane.b32.xlu0 %v2671, 32
  %v2747 = vpop.permute.xlu0 %2746
  %2748 = vrot.lane.b32.xlu0 %v2672, 32
  %v2749 = vpop.permute.xlu0 %2748
  %2750 = vrot.lane.b32.xlu0 %v2673, 32
  %v2751 = vpop.permute.xlu0 %2750
  %2752 = vrot.lane.b32.xlu0 %v2674, 32
  %v2753 = vpop.permute.xlu0 %2752
  %2754 = vrot.lane.b32.xlu0 %v2675, 32
  %v2755 = vpop.permute.xlu0 %2754
  %2756 = vrot.lane.b32.xlu0 %v2676, 32
  %v2757 = vpop.permute.xlu0 %2756
  %2758 = vrot.lane.b32.xlu0 %v2677, 32
  %v2759 = vpop.permute.xlu0 %2758
  %2760 = vrot.lane.b32.xlu0 %v2678, 32
  %v2761 = vpop.permute.xlu0 %2760
  %2762 = vrot.lane.b32.xlu0 %v2679, 32
  %v2763 = vpop.permute.xlu0 %2762
  %2764 = vrot.lane.b32.xlu0 %v2680, 32
  %v2765 = vpop.permute.xlu0 %2764
  %2766 = vrot.lane.b32.xlu0 %v2681, 32
  %v2767 = vpop.permute.xlu0 %2766
  %2768 = vrot.lane.b32.xlu0 %v2682, 32
  %v2769 = vpop.permute.xlu0 %2768
  %2770 = vrot.lane.b32.xlu0 %v2683, 32
  %v2771 = vpop.permute.xlu0 %2770
  %2772 = vrot.lane.b32.xlu0 %v2684, 32
  %v2773 = vpop.permute.xlu0 %2772
  %2774 = vrot.lane.b32.xlu0 %v2685, 32
  %v2775 = vpop.permute.xlu0 %2774
  %2776 = vrot.lane.b32.xlu0 %v2686, 32
  %v2777 = vpop.permute.xlu0 %2776
  %2778 = vrot.lane.b32.xlu0 %v2687, 32
  %v2779 = vpop.permute.xlu0 %2778
  %2780 = vrot.lane.b32.xlu0 %v2688, 32
  %v2781 = vpop.permute.xlu0 %2780
  %2782 = vrot.lane.b32.xlu0 %v2689, 32
  %v2783 = vpop.permute.xlu0 %2782
  %2784 = vrot.lane.b32.xlu0 %v2690, 32
  %v2785 = vpop.permute.xlu0 %2784
  %2786 = vrot.lane.b32.xlu0 %v2691, 32
  %v2787 = vpop.permute.xlu0 %2786
  %v2820 = vmul.f32 %v1566, %v2725
  %v2821 = vmul.f32 %v1568, %v2727
  %v2822 = vmul.f32 %v1570, %v2729
  %v2823 = vmul.f32 %v1572, %v2731
  %v2824 = vmul.f32 %v1574, %v2733
  %v2825 = vmul.f32 %v1576, %v2735
  %v2826 = vmul.f32 %v1578, %v2737
  %v2827 = vmul.f32 %v1580, %v2739
  %v2828 = vmul.f32 %v1582, %v2741
  %v2829 = vmul.f32 %v1584, %v2743
  %v2830 = vmul.f32 %v1586, %v2745
  %v2831 = vmul.f32 %v1588, %v2747
  %v2832 = vmul.f32 %v1590, %v2749
  %v2833 = vmul.f32 %v1592, %v2751
  %v2834 = vmul.f32 %v1594, %v2753
  %v2835 = vmul.f32 %v1596, %v2755
  %v2836 = vmul.f32 %v1598, %v2757
  %v2837 = vmul.f32 %v1600, %v2759
  %v2838 = vmul.f32 %v1602, %v2761
  %v2839 = vmul.f32 %v1604, %v2763
  %v2840 = vmul.f32 %v1606, %v2765
  %v2841 = vmul.f32 %v1608, %v2767
  %v2842 = vmul.f32 %v1610, %v2769
  %v2843 = vmul.f32 %v1612, %v2771
  %v2844 = vmul.f32 %v1614, %v2773
  %v2845 = vmul.f32 %v1616, %v2775
  %v2846 = vmul.f32 %v1618, %v2777
  %v2847 = vmul.f32 %v1620, %v2779
  %v2848 = vmul.f32 %v1622, %v2781
  %v2849 = vmul.f32 %v1624, %v2783
  %v2850 = vmul.f32 %v1626, %v2785
  %v2851 = vmul.f32 %v1628, %v2787
  %2884 = vrot.lane.b32.xlu0 %v2820, 64
  %v2885 = vpop.permute.xlu0 %2884
  %2886 = vrot.lane.b32.xlu0 %v2821, 64
  %v2887 = vpop.permute.xlu0 %2886
  %2888 = vrot.lane.b32.xlu0 %v2822, 64
  %v2889 = vpop.permute.xlu0 %2888
  %2890 = vrot.lane.b32.xlu0 %v2823, 64
  %v2891 = vpop.permute.xlu0 %2890
  %2892 = vrot.lane.b32.xlu0 %v2824, 64
  %v2893 = vpop.permute.xlu0 %2892
  %2894 = vrot.lane.b32.xlu0 %v2825, 64
  %v2895 = vpop.permute.xlu0 %2894
  %2896 = vrot.lane.b32.xlu0 %v2826, 64
  %v2897 = vpop.permute.xlu0 %2896
  %2898 = vrot.lane.b32.xlu0 %v2827, 64
  %v2899 = vpop.permute.xlu0 %2898
  %2900 = vrot.lane.b32.xlu0 %v2828, 64
  %v2901 = vpop.permute.xlu0 %2900
  %2902 = vrot.lane.b32.xlu0 %v2829, 64
  %v2903 = vpop.permute.xlu0 %2902
  %2904 = vrot.lane.b32.xlu0 %v2830, 64
  %v2905 = vpop.permute.xlu0 %2904
  %2906 = vrot.lane.b32.xlu0 %v2831, 64
  %v2907 = vpop.permute.xlu0 %2906
  %2908 = vrot.lane.b32.xlu0 %v2832, 64
  %v2909 = vpop.permute.xlu0 %2908
  %2910 = vrot.lane.b32.xlu0 %v2833, 64
  %v2911 = vpop.permute.xlu0 %2910
  %2912 = vrot.lane.b32.xlu0 %v2834, 64
  %v2913 = vpop.permute.xlu0 %2912
  %2914 = vrot.lane.b32.xlu0 %v2835, 64
  %v2915 = vpop.permute.xlu0 %2914
  %2916 = vrot.lane.b32.xlu0 %v2836, 64
  %v2917 = vpop.permute.xlu0 %2916
  %2918 = vrot.lane.b32.xlu0 %v2837, 64
  %v2919 = vpop.permute.xlu0 %2918
  %2920 = vrot.lane.b32.xlu0 %v2838, 64
  %v2921 = vpop.permute.xlu0 %2920
  %2922 = vrot.lane.b32.xlu0 %v2839, 64
  %v2923 = vpop.permute.xlu0 %2922
  %2924 = vrot.lane.b32.xlu0 %v2840, 64
  %v2925 = vpop.permute.xlu0 %2924
  %2926 = vrot.lane.b32.xlu0 %v2841, 64
  %v2927 = vpop.permute.xlu0 %2926
  %2928 = vrot.lane.b32.xlu0 %v2842, 64
  %v2929 = vpop.permute.xlu0 %2928
  %2930 = vrot.lane.b32.xlu0 %v2843, 64
  %v2931 = vpop.permute.xlu0 %2930
  %2932 = vrot.lane.b32.xlu0 %v2844, 64
  %v2933 = vpop.permute.xlu0 %2932
  %2934 = vrot.lane.b32.xlu0 %v2845, 64
  %v2935 = vpop.permute.xlu0 %2934
  %2936 = vrot.lane.b32.xlu0 %v2846, 64
  %v2937 = vpop.permute.xlu0 %2936
  %2938 = vrot.lane.b32.xlu0 %v2847, 64
  %v2939 = vpop.permute.xlu0 %2938
  %2940 = vrot.lane.b32.xlu0 %v2848, 64
  %v2941 = vpop.permute.xlu0 %2940
  %2942 = vrot.lane.b32.xlu0 %v2849, 64
  %v2943 = vpop.permute.xlu0 %2942
  %2944 = vrot.lane.b32.xlu0 %v2850, 64
  %v2945 = vpop.permute.xlu0 %2944
  %2946 = vrot.lane.b32.xlu0 %v2851, 64
  %v2947 = vpop.permute.xlu0 %2946
  %2980 = vst.msk [vmem:[%s12] sm:$0xff] %vm155, %v2885
  %2981 = vst.msk [vmem:[%s12 + $0x8] sm:$0xff] %vm155, %v2887
  %2982 = vst.msk [vmem:[%s12 + $0x10] sm:$0xff] %vm155, %v2889
  %2983 = vst.msk [vmem:[%s12 + $0x18] sm:$0xff] %vm155, %v2891
  %2984 = vst.msk [vmem:[%s12 + $0x20] sm:$0xff] %vm155, %v2893
  %2985 = vst.msk [vmem:[%s12 + $0x28] sm:$0xff] %vm155, %v2895
  %2986 = vst.msk [vmem:[%s12 + $0x30] sm:$0xff] %vm155, %v2897
  %2987 = vst.msk [vmem:[%s12 + $0x38] sm:$0xff] %vm155, %v2899
  %2988 = vst.msk [vmem:[%s12 + $0x40] sm:$0xff] %vm155, %v2901
  %2989 = vst.msk [vmem:[%s12 + $0x48] sm:$0xff] %vm155, %v2903
  %2990 = vst.msk [vmem:[%s12 + $0x50] sm:$0xff] %vm155, %v2905
  %2991 = vst.msk [vmem:[%s12 + $0x58] sm:$0xff] %vm155, %v2907
  %2992 = vst.msk [vmem:[%s12 + $0x60] sm:$0xff] %vm155, %v2909
  %2993 = vst.msk [vmem:[%s12 + $0x68] sm:$0xff] %vm155, %v2911
  %2994 = vst.msk [vmem:[%s12 + $0x70] sm:$0xff] %vm155, %v2913
  %2995 = vst.msk [vmem:[%s12 + $0x78] sm:$0xff] %vm155, %v2915
  %2996 = vst.msk [vmem:[%s12 + $0x80] sm:$0xff] %vm155, %v2917
  %2997 = vst.msk [vmem:[%s12 + $0x88] sm:$0xff] %vm155, %v2919
  %2998 = vst.msk [vmem:[%s12 + $0x90] sm:$0xff] %vm155, %v2921
  %2999 = vst.msk [vmem:[%s12 + $0x98] sm:$0xff] %vm155, %v2923
  %3000 = vst.msk [vmem:[%s12 + $0xa0] sm:$0xff] %vm155, %v2925
  %3001 = vst.msk [vmem:[%s12 + $0xa8] sm:$0xff] %vm155, %v2927
  %3002 = vst.msk [vmem:[%s12 + $0xb0] sm:$0xff] %vm155, %v2929
  %3003 = vst.msk [vmem:[%s12 + $0xb8] sm:$0xff] %vm155, %v2931
  %3004 = vst.msk [vmem:[%s12 + $0xc0] sm:$0xff] %vm155, %v2933
  %3005 = vst.msk [vmem:[%s12 + $0xc8] sm:$0xff] %vm155, %v2935
  %3006 = vst.msk [vmem:[%s12 + $0xd0] sm:$0xff] %vm155, %v2937
  %3007 = vst.msk [vmem:[%s12 + $0xd8] sm:$0xff] %vm155, %v2939
  %3008 = vst.msk [vmem:[%s12 + $0xe0] sm:$0xff] %vm155, %v2941
  %3009 = vst.msk [vmem:[%s12 + $0xe8] sm:$0xff] %vm155, %v2943
  %3010 = vst.msk [vmem:[%s12 + $0xf0] sm:$0xff] %vm155, %v2945
  %3011 = vst.msk [vmem:[%s12 + $0xf8] sm:$0xff] %vm155, %v2947
  %3012 = vrot.lane.b32.xlu0 %v2660, 96
  %v3013 = vpop.permute.xlu0 %3012
  %3014 = vrot.lane.b32.xlu0 %v2661, 96
  %v3015 = vpop.permute.xlu0 %3014
  %3016 = vrot.lane.b32.xlu0 %v2662, 96
  %v3017 = vpop.permute.xlu0 %3016
  %3018 = vrot.lane.b32.xlu0 %v2663, 96
  %v3019 = vpop.permute.xlu0 %3018
  %3020 = vrot.lane.b32.xlu0 %v2664, 96
  %v3021 = vpop.permute.xlu0 %3020
  %3022 = vrot.lane.b32.xlu0 %v2665, 96
  %v3023 = vpop.permute.xlu0 %3022
  %3024 = vrot.lane.b32.xlu0 %v2666, 96
  %v3025 = vpop.permute.xlu0 %3024
  %3026 = vrot.lane.b32.xlu0 %v2667, 96
  %v3027 = vpop.permute.xlu0 %3026
  %3028 = vrot.lane.b32.xlu0 %v2668, 96
  %v3029 = vpop.permute.xlu0 %3028
  %3030 = vrot.lane.b32.xlu0 %v2669, 96
  %v3031 = vpop.permute.xlu0 %3030
  %3032 = vrot.lane.b32.xlu0 %v2670, 96
  %v3033 = vpop.permute.xlu0 %3032
  %3034 = vrot.lane.b32.xlu0 %v2671, 96
  %v3035 = vpop.permute.xlu0 %3034
  %3036 = vrot.lane.b32.xlu0 %v2672, 96
  %v3037 = vpop.permute.xlu0 %3036
  %3038 = vrot.lane.b32.xlu0 %v2673, 96
  %v3039 = vpop.permute.xlu0 %3038
  %3040 = vrot.lane.b32.xlu0 %v2674, 96
  %v3041 = vpop.permute.xlu0 %3040
  %3042 = vrot.lane.b32.xlu0 %v2675, 96
  %v3043 = vpop.permute.xlu0 %3042
  %3044 = vrot.lane.b32.xlu0 %v2676, 96
  %v3045 = vpop.permute.xlu0 %3044
  %3046 = vrot.lane.b32.xlu0 %v2677, 96
  %v3047 = vpop.permute.xlu0 %3046
  %3048 = vrot.lane.b32.xlu0 %v2678, 96
  %v3049 = vpop.permute.xlu0 %3048
  %3050 = vrot.lane.b32.xlu0 %v2679, 96
  %v3051 = vpop.permute.xlu0 %3050
  %3052 = vrot.lane.b32.xlu0 %v2680, 96
  %v3053 = vpop.permute.xlu0 %3052
  %3054 = vrot.lane.b32.xlu0 %v2681, 96
  %v3055 = vpop.permute.xlu0 %3054
  %3056 = vrot.lane.b32.xlu0 %v2682, 96
  %v3057 = vpop.permute.xlu0 %3056
  %3058 = vrot.lane.b32.xlu0 %v2683, 96
  %v3059 = vpop.permute.xlu0 %3058
  %3060 = vrot.lane.b32.xlu0 %v2684, 96
  %v3061 = vpop.permute.xlu0 %3060
  %3062 = vrot.lane.b32.xlu0 %v2685, 96
  %v3063 = vpop.permute.xlu0 %3062
  %3064 = vrot.lane.b32.xlu0 %v2686, 96
  %v3065 = vpop.permute.xlu0 %3064
  %3066 = vrot.lane.b32.xlu0 %v2687, 96
  %v3067 = vpop.permute.xlu0 %3066
  %3068 = vrot.lane.b32.xlu0 %v2688, 96
  %v3069 = vpop.permute.xlu0 %3068
  %3070 = vrot.lane.b32.xlu0 %v2689, 96
  %v3071 = vpop.permute.xlu0 %3070
  %3072 = vrot.lane.b32.xlu0 %v2690, 96
  %v3073 = vpop.permute.xlu0 %3072
  %3074 = vrot.lane.b32.xlu0 %v2691, 96
  %v3075 = vpop.permute.xlu0 %3074
  %3108 = vst.msk [vmem:[%s13] sm:$0xff] %vm155, %v3013
  %3109 = vst.msk [vmem:[%s13 + $0x8] sm:$0xff] %vm155, %v3015
  %3110 = vst.msk [vmem:[%s13 + $0x10] sm:$0xff] %vm155, %v3017
  %3111 = vst.msk [vmem:[%s13 + $0x18] sm:$0xff] %vm155, %v3019
  %3112 = vst.msk [vmem:[%s13 + $0x20] sm:$0xff] %vm155, %v3021
  %3113 = vst.msk [vmem:[%s13 + $0x28] sm:$0xff] %vm155, %v3023
  %3114 = vst.msk [vmem:[%s13 + $0x30] sm:$0xff] %vm155, %v3025
  %3115 = vst.msk [vmem:[%s13 + $0x38] sm:$0xff] %vm155, %v3027
  %3116 = vst.msk [vmem:[%s13 + $0x40] sm:$0xff] %vm155, %v3029
  %3117 = vst.msk [vmem:[%s13 + $0x48] sm:$0xff] %vm155, %v3031
  %3118 = vst.msk [vmem:[%s13 + $0x50] sm:$0xff] %vm155, %v3033
  %3119 = vst.msk [vmem:[%s13 + $0x58] sm:$0xff] %vm155, %v3035
  %3120 = vst.msk [vmem:[%s13 + $0x60] sm:$0xff] %vm155, %v3037
  %3121 = vst.msk [vmem:[%s13 + $0x68] sm:$0xff] %vm155, %v3039
  %3122 = vst.msk [vmem:[%s13 + $0x70] sm:$0xff] %vm155, %v3041
  %3123 = vst.msk [vmem:[%s13 + $0x78] sm:$0xff] %vm155, %v3043
  %3124 = vst.msk [vmem:[%s13 + $0x80] sm:$0xff] %vm155, %v3045
  %3125 = vst.msk [vmem:[%s13 + $0x88] sm:$0xff] %vm155, %v3047
  %3126 = vst.msk [vmem:[%s13 + $0x90] sm:$0xff] %vm155, %v3049
  %3127 = vst.msk [vmem:[%s13 + $0x98] sm:$0xff] %vm155, %v3051
  %3128 = vst.msk [vmem:[%s13 + $0xa0] sm:$0xff] %vm155, %v3053
  %3129 = vst.msk [vmem:[%s13 + $0xa8] sm:$0xff] %vm155, %v3055
  %3130 = vst.msk [vmem:[%s13 + $0xb0] sm:$0xff] %vm155, %v3057
  %3131 = vst.msk [vmem:[%s13 + $0xb8] sm:$0xff] %vm155, %v3059
  %3132 = vst.msk [vmem:[%s13 + $0xc0] sm:$0xff] %vm155, %v3061
  %3133 = vst.msk [vmem:[%s13 + $0xc8] sm:$0xff] %vm155, %v3063
  %3134 = vst.msk [vmem:[%s13 + $0xd0] sm:$0xff] %vm155, %v3065
  %3135 = vst.msk [vmem:[%s13 + $0xd8] sm:$0xff] %vm155, %v3067
  %3136 = vst.msk [vmem:[%s13 + $0xe0] sm:$0xff] %vm155, %v3069
  %3137 = vst.msk [vmem:[%s13 + $0xe8] sm:$0xff] %vm155, %v3071
  %3138 = vst.msk [vmem:[%s13 + $0xf0] sm:$0xff] %vm155, %v3073
  %3139 = vst.msk [vmem:[%s13 + $0xf8] sm:$0xff] %vm155, %v3075
  // Predicated region
  $region50: #{tpu_custom_call.1} parent=0 // pred_check
    _
  $region51: #{tpu_custom_call.1} parent=0 // pred_check_branch
    %3141 = sbr.rel (0) target = $region53
  $region52: #{tpu_custom_call.1} parent=0 // pred_region
    _
  $region53: #{tpu_custom_call.1} parent=0 // pred_fallthru
    _
  // Predicated region
  $region54: #{tpu_custom_call.1} parent=0 // pred_check
    _
  $region55: #{tpu_custom_call.1} parent=0 // pred_check_branch
    %3143 = sbr.rel (0) target = $region57
  $region56: #{tpu_custom_call.1} parent=0 // pred_region
    _
  $region57: #{tpu_custom_call.1} parent=0 // pred_fallthru
    _
  // Predicated region
  $region58: #{tpu_custom_call.1} parent=0 // pred_check
    _
  $region59: #{tpu_custom_call.1} parent=0 // pred_check_branch
    %3145 = sbr.rel (0) target = $region61
  $region60: #{tpu_custom_call.1} parent=0 // pred_region
    _
  $region61: #{tpu_custom_call.1} parent=0 // pred_fallthru
    _
  // Predicated region
  $region62: #{tpu_custom_call.1} parent=0 // pred_check
    _
  $region63: #{tpu_custom_call.1} parent=0 // pred_check_branch
    %3147 = sbr.rel (0) target = $region65
  $region64: #{tpu_custom_call.1} parent=0 // pred_region
    _
  $region65: #{tpu_custom_call.1} parent=0 // pred_fallthru
    _

</llo_original>
